<compile_context>
chip_gen: v5e
topology: v5e:2x2
jax: 0.10.0
libtpu: 0.0.40
codegen_flags: <defaults>
</compile_context>

<pallas_src>
import jax
import jax.numpy as jnp
import numpy as np
from jax.experimental import pallas as pl
from jax.experimental.pallas import tpu as pltpu


def _self_attention_kernel(x_q_ref, x_k_ref, mt_ref, bfg_ref, wvh_ref, bvh_ref,
                           gamma_ref, o_ref, p_scr, m_scr, l_scr, acc_scr):
    """One (batch, q_tile, kv_tile) grid step.

    Channel-first layout: x blocks are (1, C, T) so the spatial axis sits on
    the 128-wide lane dimension.  Scores are kept as (TK, TQ) (kv on sublanes,
    queries on lanes) so softmax statistics are (1, TQ) rows and the output
    accumulator is (C, TQ) with no transposes anywhere in the kernel.
    """
    ki = pl.program_id(2)
    nk = pl.num_programs(2)

    @pl.when(ki == 0)
    def _init():
        # Query-side projection of the fused score matrix:
        #   P = M^T @ Xq + (Wg^T bf)            -> (C, TQ), once per q-tile
        p_scr[...] = (jnp.dot(mt_ref[...], x_q_ref[0],
                              preferred_element_type=jnp.float32)
                      + bfg_ref[...])
        m_scr[...] = jnp.full(m_scr.shape, -jnp.inf, jnp.float32)
        l_scr[...] = jnp.zeros(l_scr.shape, jnp.float32)
        acc_scr[...] = jnp.zeros(acc_scr.shape, jnp.float32)

    x_k = x_k_ref[0]                                           # (C, TK), bf16

    # Scores s[j, i] = x_k[:, j] . P[:, i]  (contraction over C, no explicit .T)
    s = jax.lax.dot_general(x_k, p_scr[...].astype(x_k.dtype),
                            (((0,), (0,)), ((), ())),
                            preferred_element_type=jnp.float32)   # (TK, TQ) f32

    # Online softmax update (per-query-column statistics, all f32 on VPU/EUP).
    m_prev = m_scr[...]                                        # (1, TQ)
    m_new = jnp.maximum(m_prev, jnp.max(s, axis=0, keepdims=True))
    alpha = jnp.exp(m_prev - m_new)                            # (1, TQ)
    p = jnp.exp(s - m_new)                                     # (TK, TQ) f32
    l_scr[...] = alpha * l_scr[...] + jnp.sum(p, axis=0, keepdims=True)
    m_scr[...] = m_new

    # Value path fused with the output projection: accumulate on raw X only,
    # acc[c, i] += sum_j X_k[c, j] * p[j, i]; Wvh/bvh are applied in finalize.
    acc_scr[...] = alpha * acc_scr[...] + jnp.dot(
        x_k, p.astype(x_k.dtype), preferred_element_type=jnp.float32)  # (C, TQ)

    @pl.when(ki == nk - 1)
    def _finalize():
        inv_l = pl.reciprocal(l_scr[...], approx=True)         # (1, TQ) on EUP
        att_x = acc_scr[...] * inv_l                           # (C, TQ) = X @ P_norm
        out = jnp.dot(wvh_ref[...], att_x,
                      preferred_element_type=jnp.float32) + bvh_ref[...]
        o_ref[0] = (x_q_ref[0] + gamma_ref[0] * out).astype(o_ref.dtype)


def _pick_tile(n, max_tile):
    """Largest multiple-of-128 divisor of n that is <= max_tile.

    Falls back to the full extent n (legal: block dim == array dim) when no
    128-multiple divisor exists (e.g. small or irregular N).
    """
    best = 0
    cap = min(n, max_tile)
    t = 128
    while t <= cap:
        if n % t == 0:
            best = t
        t += 128
    return best if best > 0 else n


def self_attention_pallas(x_nchw, params, *, tq=512, tk=4096):
    """tq / tk are *caps*; the actual tile is the largest 128-multiple divisor."""
    bs, ch, w, h = x_nchw.shape
    n = w * h
    tq = _pick_tile(n, tq)
    tk = _pick_tile(n, tk)

    # v7x megacore load balance: keep bs * n_q >= 2 so both TCs get work.
    if bs * (n // tq) < 2:
        smaller = _pick_tile(n, tq // 2)
        if 128 <= smaller < tq:
            tq = smaller

    # NCHW -> (bs, C, N): pure reshape (contiguous collapse), no HBM transpose.
    x_cn = x_nchw.reshape(bs, ch, n)
    # Key/value stream (potentially re-read across q-tiles) in bf16: MXU would
    # truncate to bf16 anyway, so this only halves HBM/DMA/VMEM traffic.
    # The query/residual stream stays f32 so the residual add is exact.
    x_kv = x_cn.astype(jnp.bfloat16)

    f32 = jnp.float32
    hi = jax.lax.Precision.HIGHEST
    # Fused f/g score matrix (query-only terms dropped; exact under softmax over j):
    #   scores[i, j] = x_i^T (Wf^T Wg) x_j + (Wg^T bf) . x_j
    mt = jnp.dot(params["wg"].T, params["wf"], precision=hi).astype(f32)       # (C, C) = M^T
    bfg = jnp.dot(params["wg"].T, params["bf"],
                  precision=hi).reshape(ch, 1).astype(f32)                     # (C, 1)
    # Fused value/output projection (exact because softmax columns sum to 1):
    #   Wv (Wh X + bh) P_norm + bv = Wvh (X P_norm) + bvh
    wvh = jnp.dot(params["wv"], params["wh"], precision=hi).astype(f32)        # (C, C)
    bvh = (jnp.dot(params["wv"], params["bh"], precision=hi)
           + params["bv"]).reshape(ch, 1).astype(f32)                          # (C, 1)
    gamma = params["gamma"].reshape(1).astype(f32)                             # scalar -> SMEM

    n_q = n // tq
    n_k = n // tk
    const2d = lambda b, qi, ki: (0, 0)

    out = pl.pallas_call(
        _self_attention_kernel,
        out_shape=jax.ShapeDtypeStruct((bs, ch, n), x_nchw.dtype),
        grid=(bs, n_q, n_k),
        in_specs=[
            pl.BlockSpec((1, ch, tq), lambda b, qi, ki: (b, 0, qi)),   # X query (f32)
            pl.BlockSpec((1, ch, tk), lambda b, qi, ki: (b, 0, ki)),   # X key/value (bf16)
            pl.BlockSpec((ch, ch), const2d),                           # M^T = Wg^T Wf
            pl.BlockSpec((ch, 1), const2d),                            # Wg^T bf
            pl.BlockSpec((ch, ch), const2d),                           # Wvh = Wv Wh
            pl.BlockSpec((ch, 1), const2d),                            # bvh = Wv bh + bv
            pl.BlockSpec(memory_space=pltpu.MemorySpace.SMEM),         # gamma (scalar)
        ],
        out_specs=pl.BlockSpec((1, ch, tq), lambda b, qi, ki: (b, 0, qi)),
        scratch_shapes=[
            pltpu.VMEM((ch, tq), jnp.float32),   # P = M^T Xq + b   (per q-tile)
            pltpu.VMEM((1, tq), jnp.float32),    # running max  m
            pltpu.VMEM((1, tq), jnp.float32),    # running sum  l
            pltpu.VMEM((ch, tq), jnp.float32),   # un-normalized X @ P accumulator
        ],
        compiler_params=pltpu.CompilerParams(
            dimension_semantics=("parallel", "parallel", "arbitrary"),
            # Large kv slabs + (TK, TQ) f32 score temporaries can exceed the
            # 16/32 MiB scoped defaults; 48 MiB is still < v7x's 64 MiB physical.
            vmem_limit_bytes=48 * 1024 * 1024),
    )(x_cn, x_kv, mt, bfg, wvh, bvh, gamma)

    # (bs, C, N) -> NCHW: free reshape.
    return out.reshape(bs, ch, w, h)


def self_attention_reference(x, params):
    """Pure-JAX, unfused reimplementation of the PyTorch forward (correctness check)."""
    bs, ch, w, h = x.shape

    def conv1x1(t, W, b):
        return jnp.einsum("oc,bcij->boij", W, t) + b[None, :, None, None]

    f = conv1x1(x, params["wf"], params["bf"]).reshape(bs, -1, h * w).transpose(0, 2, 1)
    g = conv1x1(x, params["wg"], params["bg"]).reshape(bs, -1, h * w)
    att = jnp.einsum("bnc,bcm->bnm", f, g)
    att = jax.nn.softmax(att, axis=-1).transpose(0, 2, 1)
    hh = conv1x1(x, params["wh"], params["bh"]).reshape(bs, -1, h * w)
    att_h = jnp.einsum("bcn,bnm->bcm", hh, att).reshape(bs, ch, w, h)
    att_h = conv1x1(att_h, params["wv"], params["bv"])
    return x + params["gamma"].reshape(()) * att_h


if __name__ == "__main__":
    # in_ch=32, k=8 -> inner dim ch//k = 4; 16x16 feature map -> N = 256.
    bs, ch, w, h = 2, 32, 16, 16
    k = 8
    ck = ch // k

    key = jax.random.PRNGKey(0)
    keys = jax.random.split(key, 10)
    scale = 0.1
    params = {
        "wf": scale * jax.random.normal(keys[0], (ck, ch), jnp.float32),
        "bf": scale * jax.random.normal(keys[1], (ck,), jnp.float32),
        "wg": scale * jax.random.normal(keys[2], (ck, ch), jnp.float32),
        "bg": scale * jax.random.normal(keys[3], (ck,), jnp.float32),
        "wh": scale * jax.random.normal(keys[4], (ch, ch), jnp.float32),
        "bh": scale * jax.random.normal(keys[5], (ch,), jnp.float32),
        "wv": scale * jax.random.normal(keys[6], (ch, ch), jnp.float32),
        "bv": scale * jax.random.normal(keys[7], (ch,), jnp.float32),
        # PyTorch initializes gamma to 0 (output == x). Use a nonzero value so the
        # attention path is actually exercised by the check.
        "gamma": jnp.array([0.5], jnp.float32),
    }

    x = jax.random.normal(keys[8], (bs, ch, w, h), jnp.float32)

    # Default (large) tiles: single full-N kv slab, X streamed once per batch.
    out_big = self_attention_pallas(x, params)
    # Forced-small tiles: exercises the multi q-tile / multi kv-step online softmax.
    out_small = self_attention_pallas(x, params, tq=128, tk=128)
    jax.block_until_ready((out_big, out_small))

    ref = self_attention_reference(x, params)
    # Default TPU matmul precision runs bf16 MXU passes (kernel and jnp reference),
    # plus bf16 k/v stream and the approximate EUP reciprocal -> loose-ish tolerance.
    np.testing.assert_allclose(np.asarray(out_big), np.asarray(ref), rtol=2e-2, atol=2e-2)
    np.testing.assert_allclose(np.asarray(out_small), np.asarray(ref), rtol=2e-2, atol=2e-2)

    print("KERNEL_OK")
</pallas_src>

<mosaic_0001>
module attributes {stable_mosaic.version = 11 : i64} {
  func.func @_self_attention_kernel(%arg0: i32, %arg1: i32, %arg2: i32, %arg3: memref<1x32x256xf32, #tpu.memory_space<vmem>>, %arg4: memref<1x32x256xbf16, #tpu.memory_space<vmem>>, %arg5: memref<32x32xf32, #tpu.memory_space<vmem>>, %arg6: memref<32x1xf32, #tpu.memory_space<vmem>>, %arg7: memref<32x32xf32, #tpu.memory_space<vmem>>, %arg8: memref<32x1xf32, #tpu.memory_space<vmem>>, %arg9: memref<1xf32, #tpu.memory_space<smem>>, %arg10: memref<1x32x256xf32, #tpu.memory_space<vmem>>, %arg11: memref<32x256xf32, #tpu.memory_space<vmem>>, %arg12: memref<1x256xf32, #tpu.memory_space<vmem>>, %arg13: memref<1x256xf32, #tpu.memory_space<vmem>>, %arg14: memref<32x256xf32, #tpu.memory_space<vmem>>) attributes {dimension_semantics = [#tpu.dimension_semantics<parallel>, #tpu.dimension_semantics<parallel>, #tpu.dimension_semantics<arbitrary>], iteration_bounds = array<i64: 2, 1, 1>, scalar_prefetch = 0 : i64, scratch_operands = 4 : i64, tpu.core_type = #tpu.core_type<tc>, window_params = [{transform_indices = @transform_0, window_bounds = array<i64: 1, 32, 256>}, {transform_indices = @transform_1, window_bounds = array<i64: 1, 32, 256>}, {pipeline_mode = #tpu.pipeline_mode<synchronous>, transform_indices = @transform_2, window_bounds = array<i64: 32, 32>}, {pipeline_mode = #tpu.pipeline_mode<synchronous>, transform_indices = @transform_3, window_bounds = array<i64: 32, 1>}, {pipeline_mode = #tpu.pipeline_mode<synchronous>, transform_indices = @transform_4, window_bounds = array<i64: 32, 32>}, {pipeline_mode = #tpu.pipeline_mode<synchronous>, transform_indices = @transform_5, window_bounds = array<i64: 32, 1>}, {transform_indices = @transform_6, window_bounds = array<i64: 1>}, {transform_indices = @transform_7, window_bounds = array<i64: 1, 32, 256>}]} {
    %c0_i32 = arith.constant 0 : i32
    %0 = arith.cmpi eq, %arg2, %c0_i32 : i32
    %1 = arith.extui %0 : i1 to i32
    %c0_i32_0 = arith.constant 0 : i32
    %2 = arith.cmpi ne, %1, %c0_i32_0 : i32
    scf.if %2 {
      %c0_22 = arith.constant 0 : index
      %c0_23 = arith.constant 0 : index
      %34 = vector.load %arg5[%c0_22, %c0_23] : memref<32x32xf32, #tpu.memory_space<vmem>>, vector<32x32xf32>
      %c0_24 = arith.constant 0 : index
      %c0_25 = arith.constant 0 : index
      %c0_26 = arith.constant 0 : index
      %35 = vector.load %arg3[%c0_24, %c0_25, %c0_26] : memref<1x32x256xf32, #tpu.memory_space<vmem>>, vector<1x32x256xf32>
      %36 = vector.shape_cast %35 : vector<1x32x256xf32> to vector<32x256xf32>
      %cst_27 = arith.constant dense<0.000000e+00> : vector<32x256xf32>
      %37 = tpu.matmul %34, %36, %cst_27 {dimension_numbers = #tpu.dot_dimension_numbers<[1], [0], [0], [1], [0, 0, 1, 1], [], []>} : vector<32x32xf32>, vector<32x256xf32>, vector<32x256xf32> -> vector<32x256xf32>
      %c0_28 = arith.constant 0 : index
      %c0_29 = arith.constant 0 : index
      %38 = vector.load %arg6[%c0_28, %c0_29] : memref<32x1xf32, #tpu.memory_space<vmem>>, vector<32x1xf32>
      %39 = vector.broadcast %38 : vector<32x1xf32> to vector<32x256xf32>
      %40 = arith.addf %37, %39 : vector<32x256xf32>
      %c0_30 = arith.constant 0 : index
      %c0_31 = arith.constant 0 : index
      %41 = vector.load %arg11[%c0_30, %c0_31] : memref<32x256xf32, #tpu.memory_space<vmem>>, vector<32x256xf32>
      tpu.vector_store %arg11[%c0_30, %c0_31], %40 {strides = array<i32>} : memref<32x256xf32, #tpu.memory_space<vmem>>, vector<32x256xf32>,
      %cst_32 = arith.constant 0xFF800000 : f32
      %42 = vector.broadcast %cst_32 : f32 to vector<1x256xf32>
      %c0_33 = arith.constant 0 : index
      %c0_34 = arith.constant 0 : index
      %43 = vector.load %arg12[%c0_33, %c0_34] : memref<1x256xf32, #tpu.memory_space<vmem>>, vector<1x256xf32>
      tpu.vector_store %arg12[%c0_33, %c0_34], %42 {strides = array<i32>} : memref<1x256xf32, #tpu.memory_space<vmem>>, vector<1x256xf32>,
      %cst_35 = arith.constant 0.000000e+00 : f32
      %44 = vector.broadcast %cst_35 : f32 to vector<1x256xf32>
      %c0_36 = arith.constant 0 : index
      %c0_37 = arith.constant 0 : index
      %45 = vector.load %arg13[%c0_36, %c0_37] : memref<1x256xf32, #tpu.memory_space<vmem>>, vector<1x256xf32>
      tpu.vector_store %arg13[%c0_36, %c0_37], %44 {strides = array<i32>} : memref<1x256xf32, #tpu.memory_space<vmem>>, vector<1x256xf32>,
      %cst_38 = arith.constant 0.000000e+00 : f32
      %46 = vector.broadcast %cst_38 : f32 to vector<32x256xf32>
      %c0_39 = arith.constant 0 : index
      %c0_40 = arith.constant 0 : index
      %47 = vector.load %arg14[%c0_39, %c0_40] : memref<32x256xf32, #tpu.memory_space<vmem>>, vector<32x256xf32>
      tpu.vector_store %arg14[%c0_39, %c0_40], %46 {strides = array<i32>} : memref<32x256xf32, #tpu.memory_space<vmem>>, vector<32x256xf32>,
    } else {
    }
    %c0 = arith.constant 0 : index
    %c0_1 = arith.constant 0 : index
    %c0_2 = arith.constant 0 : index
    %3 = vector.load %arg4[%c0, %c0_1, %c0_2] : memref<1x32x256xbf16, #tpu.memory_space<vmem>>, vector<1x32x256xbf16>
    %4 = vector.shape_cast %3 : vector<1x32x256xbf16> to vector<32x256xbf16>
    %c0_3 = arith.constant 0 : index
    %c0_4 = arith.constant 0 : index
    %5 = vector.load %arg11[%c0_3, %c0_4] : memref<32x256xf32, #tpu.memory_space<vmem>>, vector<32x256xf32>
    %6 = arith.truncf %5 : vector<32x256xf32> to vector<32x256xbf16>
    %cst = arith.constant dense<0.000000e+00> : vector<256x256xf32>
    %7 = tpu.matmul %4, %6, %cst {dimension_numbers = #tpu.dot_dimension_numbers<[0], [0], [1], [1], [0, 1, 1, 1], [], []>} : vector<32x256xbf16>, vector<32x256xbf16>, vector<256x256xf32> -> vector<256x256xf32>
    %c0_5 = arith.constant 0 : index
    %c0_6 = arith.constant 0 : index
    %8 = vector.load %arg12[%c0_5, %c0_6] : memref<1x256xf32, #tpu.memory_space<vmem>>, vector<1x256xf32>
    %cst_7 = arith.constant dense<0xFF800000> : vector<256xf32>
    %9 = vector.multi_reduction <maximumf>, %7, %cst_7 [0] : vector<256x256xf32> to vector<256xf32>
    %10 = vector.shape_cast %9 : vector<256xf32> to vector<1x256xf32>
    %11 = arith.maximumf %8, %10 : vector<1x256xf32>
    %12 = arith.subf %8, %11 : vector<1x256xf32>
    %13 = math.exp %12 : vector<1x256xf32>
    %14 = vector.broadcast %11 : vector<1x256xf32> to vector<256x256xf32>
    %15 = arith.subf %7, %14 : vector<256x256xf32>
    %16 = math.exp %15 : vector<256x256xf32>
    %c0_8 = arith.constant 0 : index
    %c0_9 = arith.constant 0 : index
    %17 = vector.load %arg13[%c0_8, %c0_9] : memref<1x256xf32, #tpu.memory_space<vmem>>, vector<1x256xf32>
    %18 = arith.mulf %13, %17 : vector<1x256xf32>
    %cst_10 = arith.constant dense<0.000000e+00> : vector<256xf32>
    %19 = vector.multi_reduction <add>, %16, %cst_10 [0] : vector<256x256xf32> to vector<256xf32>
    %20 = vector.shape_cast %19 : vector<256xf32> to vector<1x256xf32>
    %21 = arith.addf %18, %20 : vector<1x256xf32>
    %c0_11 = arith.constant 0 : index
    %c0_12 = arith.constant 0 : index
    %22 = vector.load %arg13[%c0_11, %c0_12] : memref<1x256xf32, #tpu.memory_space<vmem>>, vector<1x256xf32>
    tpu.vector_store %arg13[%c0_11, %c0_12], %21 {strides = array<i32>} : memref<1x256xf32, #tpu.memory_space<vmem>>, vector<1x256xf32>,
    %c0_13 = arith.constant 0 : index
    %c0_14 = arith.constant 0 : index
    %23 = vector.load %arg12[%c0_13, %c0_14] : memref<1x256xf32, #tpu.memory_space<vmem>>, vector<1x256xf32>
    tpu.vector_store %arg12[%c0_13, %c0_14], %11 {strides = array<i32>} : memref<1x256xf32, #tpu.memory_space<vmem>>, vector<1x256xf32>,
    %c0_15 = arith.constant 0 : index
    %c0_16 = arith.constant 0 : index
    %24 = vector.load %arg14[%c0_15, %c0_16] : memref<32x256xf32, #tpu.memory_space<vmem>>, vector<32x256xf32>
    %25 = vector.broadcast %13 : vector<1x256xf32> to vector<32x256xf32>
    %26 = arith.mulf %25, %24 : vector<32x256xf32>
    %27 = arith.truncf %16 : vector<256x256xf32> to vector<256x256xbf16>
    %cst_17 = arith.constant dense<0.000000e+00> : vector<32x256xf32>
    %28 = tpu.matmul %4, %27, %cst_17 {dimension_numbers = #tpu.dot_dimension_numbers<[1], [0], [0], [1], [0, 0, 1, 1], [], []>} : vector<32x256xbf16>, vector<256x256xbf16>, vector<32x256xf32> -> vector<32x256xf32>
    %29 = arith.addf %26, %28 : vector<32x256xf32>
    %c0_18 = arith.constant 0 : index
    %c0_19 = arith.constant 0 : index
    %30 = vector.load %arg14[%c0_18, %c0_19] : memref<32x256xf32, #tpu.memory_space<vmem>>, vector<32x256xf32>
    tpu.vector_store %arg14[%c0_18, %c0_19], %29 {strides = array<i32>} : memref<32x256xf32, #tpu.memory_space<vmem>>, vector<32x256xf32>,
    %c0_i32_20 = arith.constant 0 : i32
    %31 = arith.cmpi eq, %arg2, %c0_i32_20 : i32
    %32 = arith.extui %31 : i1 to i32
    %c0_i32_21 = arith.constant 0 : i32
    %33 = arith.cmpi ne, %32, %c0_i32_21 : i32
    scf.if %33 {
      %c0_22 = arith.constant 0 : index
      %c0_23 = arith.constant 0 : index
      %34 = vector.load %arg13[%c0_22, %c0_23] : memref<1x256xf32, #tpu.memory_space<vmem>>, vector<1x256xf32>
      %35 = tpu.reciprocal %34 {approx = true} : vector<1x256xf32> -> vector<1x256xf32>
      %c0_24 = arith.constant 0 : index
      %c0_25 = arith.constant 0 : index
      %36 = vector.load %arg14[%c0_24, %c0_25] : memref<32x256xf32, #tpu.memory_space<vmem>>, vector<32x256xf32>
      %37 = vector.broadcast %35 : vector<1x256xf32> to vector<32x256xf32>
      %38 = arith.mulf %36, %37 : vector<32x256xf32>
      %c0_26 = arith.constant 0 : index
      %c0_27 = arith.constant 0 : index
      %39 = vector.load %arg7[%c0_26, %c0_27] : memref<32x32xf32, #tpu.memory_space<vmem>>, vector<32x32xf32>
      %cst_28 = arith.constant dense<0.000000e+00> : vector<32x256xf32>
      %40 = tpu.matmul %39, %38, %cst_28 {dimension_numbers = #tpu.dot_dimension_numbers<[1], [0], [0], [1], [0, 0, 1, 1], [], []>} : vector<32x32xf32>, vector<32x256xf32>, vector<32x256xf32> -> vector<32x256xf32>
      %c0_29 = arith.constant 0 : index
      %c0_30 = arith.constant 0 : index
      %41 = vector.load %arg8[%c0_29, %c0_30] : memref<32x1xf32, #tpu.memory_space<vmem>>, vector<32x1xf32>
      %42 = vector.broadcast %41 : vector<32x1xf32> to vector<32x256xf32>
      %43 = arith.addf %40, %42 : vector<32x256xf32>
      %c0_31 = arith.constant 0 : index
      %c0_32 = arith.constant 0 : index
      %c0_33 = arith.constant 0 : index
      %44 = vector.load %arg3[%c0_31, %c0_32, %c0_33] : memref<1x32x256xf32, #tpu.memory_space<vmem>>, vector<1x32x256xf32>
      %45 = vector.shape_cast %44 : vector<1x32x256xf32> to vector<32x256xf32>
      %c0_34 = arith.constant 0 : index
      %46 = memref.load %arg9[%c0_34] : memref<1xf32, #tpu.memory_space<smem>>
      %47 = vector.broadcast %46 : f32 to vector<32x256xf32>
      %48 = arith.mulf %47, %43 : vector<32x256xf32>
      %49 = arith.addf %45, %48 : vector<32x256xf32>
      %c0_35 = arith.constant 0 : index
      %c0_36 = arith.constant 0 : index
      %c0_37 = arith.constant 0 : index
      %50 = vector.load %arg10[%c0_35, %c0_36, %c0_37] : memref<1x32x256xf32, #tpu.memory_space<vmem>>, vector<1x32x256xf32>
      %51 = vector.shape_cast %50 : vector<1x32x256xf32> to vector<32x256xf32>
      %52 = vector.shape_cast %49 : vector<32x256xf32> to vector<1x32x256xf32>
      tpu.vector_store %arg10[%c0_35, %c0_36, %c0_37], %52 {strides = array<i32>} : memref<1x32x256xf32, #tpu.memory_space<vmem>>, vector<1x32x256xf32>,
    } else {
    }
    return
  }
  func.func @transform_0(%arg0: i32, %arg1: i32, %arg2: i32) -> (i32, i32, i32) {
    %c0_i32 = arith.constant 0 : i32
    %c0_i32_0 = arith.constant 0 : i32
    return %arg0, %c0_i32, %arg1 : i32, i32, i32
  }
  func.func @transform_1(%arg0: i32, %arg1: i32, %arg2: i32) -> (i32, i32, i32) {
    %c0_i32 = arith.constant 0 : i32
    %c0_i32_0 = arith.constant 0 : i32
    return %arg0, %c0_i32, %arg2 : i32, i32, i32
  }
  func.func @transform_2(%arg0: i32, %arg1: i32, %arg2: i32) -> (i32, i32) {
    %c0_i32 = arith.constant 0 : i32
    %c0_i32_0 = arith.constant 0 : i32
    %c0_i32_1 = arith.constant 0 : i32
    return %c0_i32, %c0_i32_0 : i32, i32
  }
  func.func @transform_3(%arg0: i32, %arg1: i32, %arg2: i32) -> (i32, i32) {
    %c0_i32 = arith.constant 0 : i32
    %c0_i32_0 = arith.constant 0 : i32
    %c0_i32_1 = arith.constant 0 : i32
    return %c0_i32, %c0_i32_0 : i32, i32
  }
  func.func @transform_4(%arg0: i32, %arg1: i32, %arg2: i32) -> (i32, i32) {
    %c0_i32 = arith.constant 0 : i32
    %c0_i32_0 = arith.constant 0 : i32
    %c0_i32_1 = arith.constant 0 : i32
    return %c0_i32, %c0_i32_0 : i32, i32
  }
  func.func @transform_5(%arg0: i32, %arg1: i32, %arg2: i32) -> (i32, i32) {
    %c0_i32 = arith.constant 0 : i32
    %c0_i32_0 = arith.constant 0 : i32
    %c0_i32_1 = arith.constant 0 : i32
    return %c0_i32, %c0_i32_0 : i32, i32
  }
  func.func @transform_6(%arg0: i32, %arg1: i32, %arg2: i32) -> i32 {
    %c0_i32 = arith.constant 0 : i32
    %c0_i32_0 = arith.constant 0 : i32
    return %c0_i32 : i32
  }
  func.func @transform_7(%arg0: i32, %arg1: i32, %arg2: i32) -> (i32, i32, i32) {
    %c0_i32 = arith.constant 0 : i32
    %c0_i32_0 = arith.constant 0 : i32
    return %arg0, %c0_i32, %arg1 : i32, i32, i32
  }
}

</mosaic_0001>

<llo_original>
// kernel: tpu_custom_call.1
$region0: #{tpu_custom_call.1}
  #allocation0 [shape = 'u32[]', space=smem, size = 0x4, offset = 0x4, fixed_abs, tag = 'smem constant byte address 0x4 - core index']
  #allocation1 [shape = 'u32[72,128]{1,0:T(1,128)}', space=vmem, size = 0x9000, scoped, tag = 'internal scratch']
  #allocation2 [shape = 'f32[32,256]{1,0:T(8,128)}', space=vmem, size = 0x8000, scoped, tag = 'scratch operand']
  #allocation3 [shape = 'f32[1,256]{1,0:T(1,128)}', space=vmem, size = 0x400, scoped, tag = 'scratch operand']
  #allocation4 [shape = 'f32[1,256]{1,0:T(1,128)}', space=vmem, size = 0x400, scoped, tag = 'scratch operand']
  #allocation5 [shape = 'f32[32,256]{1,0:T(8,128)}', space=vmem, size = 0x8000, scoped, tag = 'scratch operand']
  #allocation6 [shape = 'f32[1]{0:T(128)S(6)}', space=smem, size = 0x200, scoped, tag = 'scoped memory for tpu_custom_call.1']
  %s0 = inlined_call_operand.hbm [shape: f32[2,32,256], index: 0, kind: input, shape index: {}]
  %s1 = inlined_call_operand.vmem [shape: bf16[2,32,256], index: 1, kind: input, shape index: {}]
  %s2 = inlined_call_operand.hbm [shape: f32[32,32], index: 2, kind: input, shape index: {}]
  %s3 = inlined_call_operand.vmem [shape: f32[32,1], index: 3, kind: input, shape index: {}]
  %s4 = inlined_call_operand.hbm [shape: f32[32,32], index: 4, kind: input, shape index: {}]
  %s5 = inlined_call_operand.vmem [shape: f32[32,1], index: 5, kind: input, shape index: {}]
  %s6 = inlined_call_operand.<no memory space> [shape: f32[1], index: 6, kind: input, shape index: {}]
  %s7 = inlined_call_operand.hbm [shape: f32[2,32,256], index: 7, kind: output, shape index: {}]
  %s8 = sld [smem:[#allocation0]]
  $region81: #{tpu_custom_call.1} parent=0
    _
  %s10 = ssub.s32 1, %s8
  %s11 = scalar_select 0, %s10, %s8
  %12 = sst [smem:[#allocation6]] %s6
  $region1: #{tpu_custom_call.1} parent=0
    #allocation7 [shape = 'u8[65536]{0}', space=vmem, size = 0x10000, scoped, tag = 'input window, operand 0']
    #allocation8 [shape = 's32[2]{0}', space=sflag, size = 0x8, scoped, tag = 'scoped memory for tpu_custom_call.1']
    #allocation9 [shape = 's32[2]{0}', space=sflag, size = 0x8, scoped, tag = 'scoped memory for tpu_custom_call.1']
    #allocation10 [shape = 'u8[16384]{0}', space=vmem, size = 0x4000, scoped, tag = 'input window, operand 2, single buffered']
    #allocation11 [shape = 's32[1]{0}', space=sflag, size = 0x4, scoped, tag = 'scoped memory for tpu_custom_call.1']
    #allocation12 [shape = 'u8[16384]{0}', space=vmem, size = 0x4000, scoped, tag = 'input window, operand 4, single buffered']
    #allocation13 [shape = 'u8[65536]{0}', space=vmem, size = 0x10000, scoped, tag = 'output window, operand 0']
    %13 = vsyncpa [#allocation8], 0
    %s14 = scalar_lea.sflag [#allocation8], 1
    %15 = vsyncpa %s14, 0
    %16 = vsyncpa [#allocation11], 0
    %17 = vsyncpa [#allocation9], 0
    %s18 = scalar_lea.sflag [#allocation9], 1
    %19 = vsyncpa %s18, 0
    loop: start=0, step=1, limit=4
    $region2: #{tpu_custom_call.1} parent=1 // loop_pre_header
      _
    $region3: #{tpu_custom_call.1} parent=1 // loop_header
      %s21 = sphi 0, %s25
      %p22 = scmp.ge.s32.totalorder %s21, 4
      %s28 = sphi 0, %s47
      %s29 = sphi 0, %s43
      %s30 = sphi 0, %s39
      %s31 = sphi 0, %s28
      %s32 = sphi 0, %s29
      %s33 = sphi 0, %s30
      %s34 = sphi 0, %s31
      %s35 = sphi 0, %s32
      %s36 = sphi 0, %s33
      %s52 = sphi 0, %s54
      %s55 = sphi 0, %s52
      %s56 = sphi 0, %s55
      %s72 = sphi 0, %s56
      %s80 = sphi 0, %s82
      %s83 = sphi 0, %s80
      %s84 = sphi 0, %s83
      %s100 = sphi 0, %s84
      %s104 = sphi 0, %s104
      %s106 = sphi 0, %s104
      %s107 = sphi 0, %s106
      %s121 = sphi 0, %s107
      %s125 = sphi 0, %s125
      %s127 = sphi 0, %s125
      %s128 = sphi 0, %s127
      %s142 = sphi 0, %s128
      %s146 = sphi 0, %s146
      %s148 = sphi 0, %s146
      %s149 = sphi 0, %s148
      %s163 = sphi 0, %s149
      %s167 = sphi 0, %s167
      %s169 = sphi 0, %s167
      %s170 = sphi 0, %s169
      %s184 = sphi 0, %s170
      %s188 = sphi 0, %s188
      %s190 = sphi 0, %s188
      %s191 = sphi 0, %s190
      %s205 = sphi 0, %s191
      %s213 = sphi 0, %s215
      %s216 = sphi 0, %s213
      %s217 = sphi 0, %s216
      %s233 = sphi 0, %s217
    $region4: #{tpu_custom_call.1} parent=1 // loop_header_branch
      %24 = sbr.rel (%p22) target = $region8
    $region5: #{tpu_custom_call.1} parent=1 // loop_body
      %s26 = ssub.s32 %s21, 1
      %s27 = ssub.s32 %s21, 2
      %s37 = sadd.s32 1, %s30
      %p38 = scmp.ge.s32.totalorder %s37, 1
      %s39 = scalar_select %p38, 0, %s37
      %s40 = sadd.s32 1, %s29
      %s41 = scalar_select %p38, %s40, %s29
      %p42 = scmp.ge.s32.totalorder %s41, 1
      %s43 = scalar_select %p42, 0, %s41
      %s44 = sadd.s32 1, %s28
      %s45 = scalar_select %p42, %s44, %s28
      %p46 = scmp.ge.s32.totalorder %s45, 2
      %s47 = scalar_select %p46, 0, %s45
      %s48 = ssub.s32 %s28, %s47
      %s49 = ssub.s32 %s29, %s43
      %s50 = sor.u32 %s48, %s49
      %p51 = scmp.eq.s32.totalorder %s50, 0
      %s53 = sadd.s32 %s52, 1
      %s54 = scalar_select %p51, %s52, %s53
      %p57 = pneg %p51
      %p58 = scmp.eq.s32.totalorder %s21, 1
      %p59 = por %p57, %p58
      %p60 = scmp.ne.s32.totalorder %s52, %s55
      %p61 = scmp.eq.s32.totalorder %s21, 0
      %p62 = por %p60, %p61
      %p63 = scmp.ne.s32.totalorder %s52, %s55
      %p64 = scmp.eq.s32.totalorder %s26, 1
      %p65 = por %p63, %p64
      %p66 = scmp.ne.s32.totalorder %s55, %s56
      %p67 = scmp.eq.s32.totalorder %s26, 0
      %p68 = por %p66, %p67
      %p69 = scmp.ne.s32.totalorder %s55, %s56
      %p70 = scmp.eq.s32.totalorder %s27, 1
      %p71 = por %p69, %p70
      %p73 = scmp.ne.s32.totalorder %s56, %s72
      %p74 = scmp.eq.s32.totalorder %s27, 0
      %p75 = por %p73, %p74
      %s76 = ssub.s32 %s28, %s47
      %s77 = ssub.s32 %s30, %s39
      %s78 = sor.u32 %s76, %s77
      %p79 = scmp.eq.s32.totalorder %s78, 0
      %s81 = sadd.s32 %s80, 1
      %s82 = scalar_select %p79, %s80, %s81
      %p85 = pneg %p79
      %p86 = scmp.eq.s32.totalorder %s21, 1
      %p87 = por %p85, %p86
      %p88 = scmp.ne.s32.totalorder %s80, %s83
      %p89 = scmp.eq.s32.totalorder %s21, 0
      %p90 = por %p88, %p89
      %p91 = scmp.ne.s32.totalorder %s80, %s83
      %p92 = scmp.eq.s32.totalorder %s26, 1
      %p93 = por %p91, %p92
      %p94 = scmp.ne.s32.totalorder %s83, %s84
      %p95 = scmp.eq.s32.totalorder %s26, 0
      %p96 = por %p94, %p95
      %p97 = scmp.ne.s32.totalorder %s83, %s84
      %p98 = scmp.eq.s32.totalorder %s27, 1
      %p99 = por %p97, %p98
      %p101 = scmp.ne.s32.totalorder %s84, %s100
      %p102 = scmp.eq.s32.totalorder %s27, 0
      %p103 = por %p101, %p102
      %s105 = sadd.s32 %s104, 1
      %p108 = scmp.eq.s32.totalorder %s21, 1
      %p109 = scmp.ne.s32.totalorder %s104, %s106
      %p110 = scmp.eq.s32.totalorder %s21, 0
      %p111 = por %p109, %p110
      %p112 = scmp.ne.s32.totalorder %s104, %s106
      %p113 = scmp.eq.s32.totalorder %s26, 1
      %p114 = por %p112, %p113
      %p115 = scmp.ne.s32.totalorder %s106, %s107
      %p116 = scmp.eq.s32.totalorder %s26, 0
      %p117 = por %p115, %p116
      %p118 = scmp.ne.s32.totalorder %s106, %s107
      %p119 = scmp.eq.s32.totalorder %s27, 1
      %p120 = por %p118, %p119
      %p122 = scmp.ne.s32.totalorder %s107, %s121
      %p123 = scmp.eq.s32.totalorder %s27, 0
      %p124 = por %p122, %p123
      %s126 = sadd.s32 %s125, 1
      %p129 = scmp.eq.s32.totalorder %s21, 1
      %p130 = scmp.ne.s32.totalorder %s125, %s127
      %p131 = scmp.eq.s32.totalorder %s21, 0
      %p132 = por %p130, %p131
      %p133 = scmp.ne.s32.totalorder %s125, %s127
      %p134 = scmp.eq.s32.totalorder %s26, 1
      %p135 = por %p133, %p134
      %p136 = scmp.ne.s32.totalorder %s127, %s128
      %p137 = scmp.eq.s32.totalorder %s26, 0
      %p138 = por %p136, %p137
      %p139 = scmp.ne.s32.totalorder %s127, %s128
      %p140 = scmp.eq.s32.totalorder %s27, 1
      %p141 = por %p139, %p140
      %p143 = scmp.ne.s32.totalorder %s128, %s142
      %p144 = scmp.eq.s32.totalorder %s27, 0
      %p145 = por %p143, %p144
      %s147 = sadd.s32 %s146, 1
      %p150 = scmp.eq.s32.totalorder %s21, 1
      %p151 = scmp.ne.s32.totalorder %s146, %s148
      %p152 = scmp.eq.s32.totalorder %s21, 0
      %p153 = por %p151, %p152
      %p154 = scmp.ne.s32.totalorder %s146, %s148
      %p155 = scmp.eq.s32.totalorder %s26, 1
      %p156 = por %p154, %p155
      %p157 = scmp.ne.s32.totalorder %s148, %s149
      %p158 = scmp.eq.s32.totalorder %s26, 0
      %p159 = por %p157, %p158
      %p160 = scmp.ne.s32.totalorder %s148, %s149
      %p161 = scmp.eq.s32.totalorder %s27, 1
      %p162 = por %p160, %p161
      %p164 = scmp.ne.s32.totalorder %s149, %s163
      %p165 = scmp.eq.s32.totalorder %s27, 0
      %p166 = por %p164, %p165
      %s168 = sadd.s32 %s167, 1
      %p171 = scmp.eq.s32.totalorder %s21, 1
      %p172 = scmp.ne.s32.totalorder %s167, %s169
      %p173 = scmp.eq.s32.totalorder %s21, 0
      %p174 = por %p172, %p173
      %p175 = scmp.ne.s32.totalorder %s167, %s169
      %p176 = scmp.eq.s32.totalorder %s26, 1
      %p177 = por %p175, %p176
      %p178 = scmp.ne.s32.totalorder %s169, %s170
      %p179 = scmp.eq.s32.totalorder %s26, 0
      %p180 = por %p178, %p179
      %p181 = scmp.ne.s32.totalorder %s169, %s170
      %p182 = scmp.eq.s32.totalorder %s27, 1
      %p183 = por %p181, %p182
      %p185 = scmp.ne.s32.totalorder %s170, %s184
      %p186 = scmp.eq.s32.totalorder %s27, 0
      %p187 = por %p185, %p186
      %s189 = sadd.s32 %s188, 1
      %p192 = scmp.eq.s32.totalorder %s21, 1
      %p193 = scmp.ne.s32.totalorder %s188, %s190
      %p194 = scmp.eq.s32.totalorder %s21, 0
      %p195 = por %p193, %p194
      %p196 = scmp.ne.s32.totalorder %s188, %s190
      %p197 = scmp.eq.s32.totalorder %s26, 1
      %p198 = por %p196, %p197
      %p199 = scmp.ne.s32.totalorder %s190, %s191
      %p200 = scmp.eq.s32.totalorder %s26, 0
      %p201 = por %p199, %p200
      %p202 = scmp.ne.s32.totalorder %s190, %s191
      %p203 = scmp.eq.s32.totalorder %s27, 1
      %p204 = por %p202, %p203
      %p206 = scmp.ne.s32.totalorder %s191, %s205
      %p207 = scmp.eq.s32.totalorder %s27, 0
      %p208 = por %p206, %p207
      %s209 = ssub.s32 %s28, %s47
      %s210 = ssub.s32 %s29, %s43
      %s211 = sor.u32 %s209, %s210
      %p212 = scmp.eq.s32.totalorder %s211, 0
      %s214 = sadd.s32 %s213, 1
      %s215 = scalar_select %p212, %s213, %s214
      %p218 = pneg %p212
      %p219 = scmp.eq.s32.totalorder %s21, 1
      %p220 = por %p218, %p219
      %p221 = scmp.ne.s32.totalorder %s213, %s216
      %p222 = scmp.eq.s32.totalorder %s21, 0
      %p223 = por %p221, %p222
      %p224 = scmp.ne.s32.totalorder %s213, %s216
      %p225 = scmp.eq.s32.totalorder %s26, 1
      %p226 = por %p224, %p225
      %p227 = scmp.ne.s32.totalorder %s216, %s217
      %p228 = scmp.eq.s32.totalorder %s26, 0
      %p229 = por %p227, %p228
      %p230 = scmp.ne.s32.totalorder %s216, %s217
      %p231 = scmp.eq.s32.totalorder %s27, 1
      %p232 = por %p230, %p231
      %p234 = scmp.ne.s32.totalorder %s217, %s233
      %p235 = scmp.eq.s32.totalorder %s27, 0
      %p236 = por %p234, %p235
      %p237 = scmp.le.s32.totalorder 1, %s21
      %p238 = scmp.lt.s32.totalorder %s21, 3
      %p239 = pnand %p237, %p238
      %p240 = pneg %p239
      // Predicated region
      $region9: #{tpu_custom_call.1} parent=5 // pred_check
        _
      $region10: #{tpu_custom_call.1} parent=5 // pred_check_branch
        %242 = sbr.rel (%p239) target = $region12
      $region11: #{tpu_custom_call.1} parent=5 // pred_region
        %s243 = ssub.s32 %s21, 1
        // Predicated region
        $region13: #{tpu_custom_call.1} parent=11 // pred_check
          %p244 = pneg %p117
        $region14: #{tpu_custom_call.1} parent=11 // pred_check_branch
          %246 = sbr.rel (%p244) target = $region16
        $region15: #{tpu_custom_call.1} parent=11 // pred_region
          %248 = vsyncadd [#allocation11], 0
          %s249 = sshll.u32 %s2, 4
          %s250 = int_to_ptr.hbm [resolvable:$true] %s249
          %s251 = sshll.u32 [#allocation10], 4
          %s252 = int_to_ptr.vmem [resolvable:$true] %s251
          %257 = dma.hbm_to_vmem [thread:$0]  %s250, 512, %s252, [#allocation11], 128, 128, 8
        $region16: #{tpu_custom_call.1} parent=11 // pred_fallthru
          _
        // Predicated region
        $region17: #{tpu_custom_call.1} parent=11 // pred_check
          %p258 = pneg %p138
        $region18: #{tpu_custom_call.1} parent=11 // pred_check_branch
          %260 = sbr.rel (%p258) target = $region20
        $region19: #{tpu_custom_call.1} parent=11 // pred_region
          _
        $region20: #{tpu_custom_call.1} parent=11 // pred_fallthru
          _
        // Predicated region
        $region21: #{tpu_custom_call.1} parent=11 // pred_check
          %p261 = pneg %p159
        $region22: #{tpu_custom_call.1} parent=11 // pred_check_branch
          %263 = sbr.rel (%p261) target = $region24
        $region23: #{tpu_custom_call.1} parent=11 // pred_region
          %265 = vsyncadd [#allocation11], 0
          %s266 = sshll.u32 %s4, 4
          %s267 = int_to_ptr.hbm [resolvable:$true] %s266
          %s268 = sshll.u32 [#allocation12], 4
          %s269 = int_to_ptr.vmem [resolvable:$true] %s268
          %274 = dma.hbm_to_vmem [thread:$0]  %s267, 512, %s269, [#allocation11], 128, 128, 8
        $region24: #{tpu_custom_call.1} parent=11 // pred_fallthru
          _
        // Predicated region
        $region25: #{tpu_custom_call.1} parent=11 // pred_check
          %p275 = pneg %p180
        $region26: #{tpu_custom_call.1} parent=11 // pred_check_branch
          %277 = sbr.rel (%p275) target = $region28
        $region27: #{tpu_custom_call.1} parent=11 // pred_region
          _
        $region28: #{tpu_custom_call.1} parent=11 // pred_fallthru
          _
        // Predicated region
        $region29: #{tpu_custom_call.1} parent=11 // pred_check
          %p278 = pneg %p201
        $region30: #{tpu_custom_call.1} parent=11 // pred_check_branch
          %280 = sbr.rel (%p278) target = $region32
        $region31: #{tpu_custom_call.1} parent=11 // pred_region
          _
        $region32: #{tpu_custom_call.1} parent=11 // pred_fallthru
          _
      $region12: #{tpu_custom_call.1} parent=5 // pred_fallthru
        _
      %p281 = scmp.lt.s32.totalorder %s21, 2
      // Predicated region
      $region33: #{tpu_custom_call.1} parent=5 // pred_check
        %p282 = pneg %p281
      $region34: #{tpu_custom_call.1} parent=5 // pred_check_branch
        %284 = sbr.rel (%p282) target = $region36
      $region35: #{tpu_custom_call.1} parent=5 // pred_region
        // Predicated region
        $region37: #{tpu_custom_call.1} parent=35 // pred_check
          %p285 = pneg %p62
        $region38: #{tpu_custom_call.1} parent=35 // pred_check_branch
          %287 = sbr.rel (%p285) target = $region40
        $region39: #{tpu_custom_call.1} parent=35 // pred_region
          %s288 = sand.u32 %s52, 1
          %s289 = scalar_lea.sflag [#allocation8], %s288
          %s290 = sand.u32 %s52, 1
          %s291 = smul.addr %s290, 64
          %s292 = scalar_lea.vmem [#allocation7], %s291
          %s293 = smul.u32 2, %s29
          %295 = vsyncadd %s289, 0
          %s296 = smul.addr %s28, 8
          %s297 = sadd.s32 %s293, %s296
          %s298 = smul.addr %s297, 8
          %s299 = scalar_lea.hbm %s0, %s298
          %s300 = sshll.u32 %s299, 4
          %s301 = int_to_ptr.hbm [resolvable:$true] %s300
          %s302 = sshll.u32 %s292, 4
          %s303 = int_to_ptr.vmem [resolvable:$true] %s302
          %308 = dma.hbm_to_vmem [thread:$0]  %s301, 1024, %s303, %s289, 256, 256, 16
        $region40: #{tpu_custom_call.1} parent=35 // pred_fallthru
          _
        // Predicated region
        $region41: #{tpu_custom_call.1} parent=35 // pred_check
          %p309 = pneg %p90
        $region42: #{tpu_custom_call.1} parent=35 // pred_check_branch
          %311 = sbr.rel (%p309) target = $region44
        $region43: #{tpu_custom_call.1} parent=35 // pred_region
          %s312 = smul.u32 2, %s30
          %p313 = scmp.lt.s32.totalorder %s28, 1
          %s314 = scalar_select %p313, %s28, 1
          %p315 = scmp.lt.s32.totalorder %s312, 1
          %s316 = scalar_select %p315, %s312, 1
          %s317 = smul.addr %s314, 8
          %s318 = sadd.s32 %s316, %s317
          %s319 = smul.addr %s318, 4
          %s320 = scalar_lea.vmem %s1, %s319
          %s321 = smul.u32 2, %s30
        $region44: #{tpu_custom_call.1} parent=35 // pred_fallthru
          _
      $region36: #{tpu_custom_call.1} parent=5 // pred_fallthru
        _
      %p322 = scmp.le.s32.totalorder 1, %s21
      %p323 = scmp.lt.s32.totalorder %s21, 3
      %p324 = pnand %p322, %p323
      %p325 = pneg %p324
      // Predicated region
      $region45: #{tpu_custom_call.1} parent=5 // pred_check
        _
      $region46: #{tpu_custom_call.1} parent=5 // pred_check_branch
        %327 = sbr.rel (%p324) target = $region48
      $region47: #{tpu_custom_call.1} parent=5 // pred_region
        %s328 = ssub.s32 %s21, 1
        %s329 = sand.u32 %s55, 1
        %s330 = scalar_lea.sflag [#allocation8], %s329
        %s331 = sand.u32 %s55, 1
        %s332 = smul.addr %s331, 64
        %s333 = scalar_lea.vmem [#allocation7], %s332
        // Predicated region
        $region49: #{tpu_custom_call.1} parent=47 // pred_check
          %p334 = pneg %p68
        $region50: #{tpu_custom_call.1} parent=47 // pred_check_branch
          %336 = sbr.rel (%p334) target = $region52
        $region51: #{tpu_custom_call.1} parent=47 // pred_region
          %338 = dma.done %s330, 1024
        $region52: #{tpu_custom_call.1} parent=47 // pred_fallthru
          _
        // Predicated region
        $region53: #{tpu_custom_call.1} parent=47 // pred_check
          %p339 = pneg %p117
        $region54: #{tpu_custom_call.1} parent=47 // pred_check_branch
          %341 = sbr.rel (%p339) target = $region56
        $region55: #{tpu_custom_call.1} parent=47 // pred_region
          %343 = dma.done [#allocation11], 512
        $region56: #{tpu_custom_call.1} parent=47 // pred_fallthru
          _
        // Predicated region
        $region57: #{tpu_custom_call.1} parent=47 // pred_check
          %p344 = pneg %p159
        $region58: #{tpu_custom_call.1} parent=47 // pred_check_branch
          %346 = sbr.rel (%p344) target = $region60
        $region59: #{tpu_custom_call.1} parent=47 // pred_region
          %348 = dma.done [#allocation11], 512
        $region60: #{tpu_custom_call.1} parent=47 // pred_fallthru
          _
        %s349 = sand.u32 %s55, 1
        %s350 = scalar_lea.sflag [#allocation8], %s349
        %s351 = sand.u32 %s55, 1
        %s352 = smul.addr %s351, 64
        %s353 = scalar_lea.vmem [#allocation7], %s352
        %p354 = pneg %p68
        %p355 = pneg %p65
        %s356 = smul.u32 2, %s33
        %p357 = scmp.lt.s32.totalorder %s31, 1
        %s358 = scalar_select %p357, %s31, 1
        %p359 = scmp.lt.s32.totalorder %s356, 1
        %s360 = scalar_select %p359, %s356, 1
        %s361 = smul.addr %s358, 8
        %s362 = sadd.s32 %s360, %s361
        %s363 = smul.addr %s362, 4
        %s364 = scalar_lea.vmem %s1, %s363
        %p365 = pneg %p96
        %p366 = pneg %p93
        %p367 = pneg %p117
        %p368 = pneg %p114
        %p369 = pneg %p138
        %p370 = pneg %p135
        %p371 = pneg %p159
        %p372 = pneg %p156
        %p373 = pneg %p180
        %p374 = pneg %p177
        %p375 = pneg %p201
        %p376 = pneg %p198
        %p377 = pneg %p229
        %p378 = pneg %p226
        %s379 = sand.u32 %s216, 1
        %s380 = scalar_lea.sflag [#allocation9], %s379
        %s381 = sand.u32 %s216, 1
        %s382 = smul.addr %s381, 64
        %s383 = scalar_lea.vmem [#allocation13], %s382
        %s384 = smul.u32 2, %s32
        %s385 = smul.u32 2, %s33
        %p386 = scmp.lt.s32.totalorder %s31, 1
        %s387 = scalar_select %p386, %s31, 1
        %p388 = scmp.lt.s32.totalorder %s385, 1
        %s389 = scalar_select %p388, %s385, 1
        %s390 = smul.addr %s387, 8
        %s391 = sadd.s32 %s389, %s390
        %s392 = smul.addr %s391, 4
        %s393 = scalar_lea.vmem %s1, %s392
        %s394 = smul.u32 2, %s33
        %s395 = smul.u32 2, %s32
        %p397 = scmp.eq.s32.totalorder %s33, 0
        // Predicated region
        $region61: #{tpu_custom_call.1} parent=47 // pred_check
          %p398 = pneg %p397
        $region62: #{tpu_custom_call.1} parent=47 // pred_check_branch
          %400 = sbr.rel (%p398) target = $region64
        $region63: #{tpu_custom_call.1} parent=47 // pred_region
          %v401 = vld [vmem:[#allocation10] sm:$0xff]
          %v402 = vld [vmem:[#allocation10 + $0x8] sm:$0xff]
          %v403 = vld [vmem:[#allocation10 + $0x10] sm:$0xff]
          %v404 = vld [vmem:[#allocation10 + $0x18] sm:$0xff]
          %v405 = vld [vmem:[%s333] sm:$0xff]
          %v406 = vld [vmem:[%s333 + $0x8] sm:$0xff]
          %v407 = vld [vmem:[%s333 + $0x10] sm:$0xff]
          %v408 = vld [vmem:[%s333 + $0x18] sm:$0xff]
          %v409 = vld [vmem:[%s333 + $0x20] sm:$0xff]
          %v410 = vld [vmem:[%s333 + $0x28] sm:$0xff]
          %v411 = vld [vmem:[%s333 + $0x30] sm:$0xff]
          %v412 = vld [vmem:[%s333 + $0x38] sm:$0xff]
          %v413 = vld [vmem:[%s3] sm:$0xff]
          %v414 = vld [vmem:[%s3 + $0x8] sm:$0xff]
          %v415 = vld [vmem:[%s3 + $0x10] sm:$0xff]
          %v416 = vld [vmem:[%s3 + $0x18] sm:$0xff]
          %418 = vset.pattern.permute.xlu0 0
          %419 = vperm.xlu0 %418, %v413
          %v420 = vpop.permute.xlu0 %419
          %423 = vset.pattern.permute.xlu0 0
          %424 = vperm.xlu0 %423, %v414
          %v425 = vpop.permute.xlu0 %424
          %428 = vset.pattern.permute.xlu0 0
          %429 = vperm.xlu0 %428, %v415
          %v430 = vpop.permute.xlu0 %429
          %433 = vset.pattern.permute.xlu0 0
          %434 = vperm.xlu0 %433, %v416
          %v435 = vpop.permute.xlu0 %434
          %vm437 = vcmask 261120
          %v439 = vsel %vm437, %v401, 0
          %v442 = vsel %vm437, %v402, 0
          %v445 = vsel %vm437, %v403, 0
          %v448 = vsel %vm437, %v404, 0
          %450 = vmatpush.msra.mxu0 0.0
          %451 = vmatpush.msra.mxu0 0.0
          %452 = vmatpush.msra.mxu0 0.0
          %453 = vmatpush.msra.mxu0 0.0
          %454 = vmatpush.msra.mxu0 0.0
          %455 = vmatpush.msra.mxu0 0.0
          %456 = vmatpush.msra.mxu0 0.0
          %457 = vmatpush.msra.mxu0 0.0
          %458 = vmatpush.msra.mxu0 0.0
          %459 = vmatpush.msra.mxu0 0.0
          %460 = vmatpush.msra.mxu0 0.0
          %461 = vmatpush.msra.mxu0 0.0
          %462 = vmatpush.msra.mxu0 %v411
          %463 = vmatpush.msra.mxu0 %v409
          %464 = vmatpush.msra.mxu0 %v407
          %465 = vmatpush.msra.mxu0 %v405
          %466 = vmatmul.f32.gmra.mxu0 %v439
          %v467 = vpop.f32.mrf.mxu0
          %v468 = vadd.f32 %v420, %v467
          %469 = vmatmul.f32.gmra.mxu0 %v442
          %v470 = vpop.f32.mrf.mxu0
          %v471 = vadd.f32 %v425, %v470
          %472 = vmatmul.f32.gmra.mxu0 %v445
          %v473 = vpop.f32.mrf.mxu0
          %v474 = vadd.f32 %v430, %v473
          %475 = vmatmul.f32.gmra.mxu0 %v448
          %v476 = vpop.f32.mrf.mxu0
          %v477 = vadd.f32 %v435, %v476
          %478 = vdwg.mxu0
          %479 = vmatpush.msra.mxu0 0.0
          %480 = vmatpush.msra.mxu0 0.0
          %481 = vmatpush.msra.mxu0 0.0
          %482 = vmatpush.msra.mxu0 0.0
          %483 = vmatpush.msra.mxu0 0.0
          %484 = vmatpush.msra.mxu0 0.0
          %485 = vmatpush.msra.mxu0 0.0
          %486 = vmatpush.msra.mxu0 0.0
          %487 = vmatpush.msra.mxu0 0.0
          %488 = vmatpush.msra.mxu0 0.0
          %489 = vmatpush.msra.mxu0 0.0
          %490 = vmatpush.msra.mxu0 0.0
          %491 = vmatpush.msra.mxu0 %v412
          %492 = vmatpush.msra.mxu0 %v410
          %493 = vmatpush.msra.mxu0 %v408
          %494 = vmatpush.msra.mxu0 %v406
          %495 = vmatmul.f32.gmra.mxu0 %v439
          %v496 = vpop.f32.mrf.mxu0
          %v497 = vadd.f32 %v420, %v496
          %498 = vmatmul.f32.gmra.mxu0 %v442
          %v499 = vpop.f32.mrf.mxu0
          %v500 = vadd.f32 %v425, %v499
          %501 = vmatmul.f32.gmra.mxu0 %v445
          %v502 = vpop.f32.mrf.mxu0
          %v503 = vadd.f32 %v430, %v502
          %504 = vmatmul.f32.gmra.mxu0 %v448
          %v505 = vpop.f32.mrf.mxu0
          %v506 = vadd.f32 %v435, %v505
          %507 = vdwg.mxu0
          %508 = vst [vmem:[#allocation2] sm:$0xff] %v468
          %509 = vst [vmem:[#allocation2 + $0x8] sm:$0xff] %v497
          %510 = vst [vmem:[#allocation2 + $0x10] sm:$0xff] %v471
          %511 = vst [vmem:[#allocation2 + $0x18] sm:$0xff] %v500
          %512 = vst [vmem:[#allocation2 + $0x20] sm:$0xff] %v474
          %513 = vst [vmem:[#allocation2 + $0x28] sm:$0xff] %v503
          %514 = vst [vmem:[#allocation2 + $0x30] sm:$0xff] %v477
          %515 = vst [vmem:[#allocation2 + $0x38] sm:$0xff] %v506
          %v516 = vlaneseq
          %vm517 = vcmp.ge.s32.totalorder %v516, 0
          %vm518 = vcmp.lt.s32.totalorder %v516, 256
          %vm519 = vmand %vm517, %vm518
          %520 = vst.msk [vmem:[#allocation3] sm:$0x3] %vm519, -inf
          %521 = vst.msk [vmem:[#allocation4] sm:$0x3] %vm519, 0.0
          %522 = vst [vmem:[#allocation5] sm:$0xff] 0.0
          %523 = vst [vmem:[#allocation5 + $0x8] sm:$0xff] 0.0
          %524 = vst [vmem:[#allocation5 + $0x10] sm:$0xff] 0.0
          %525 = vst [vmem:[#allocation5 + $0x18] sm:$0xff] 0.0
          %526 = vst [vmem:[#allocation5 + $0x20] sm:$0xff] 0.0
          %527 = vst [vmem:[#allocation5 + $0x28] sm:$0xff] 0.0
          %528 = vst [vmem:[#allocation5 + $0x30] sm:$0xff] 0.0
          %529 = vst [vmem:[#allocation5 + $0x38] sm:$0xff] 0.0
        $region64: #{tpu_custom_call.1} parent=47 // pred_fallthru
          _
        %v530 = vld [vmem:[%s393] sm:$0xff]
        %v531 = vld [vmem:[%s393 + $0x8] sm:$0xff]
        %v532 = vld [vmem:[%s393 + $0x10] sm:$0xff]
        %v533 = vld [vmem:[%s393 + $0x18] sm:$0xff]
        %v534 = vld [vmem:[#allocation2] sm:$0xff]
        %v535 = vld [vmem:[#allocation2 + $0x8] sm:$0xff]
        %v536 = vld [vmem:[#allocation2 + $0x10] sm:$0xff]
        %v537 = vld [vmem:[#allocation2 + $0x18] sm:$0xff]
        %v538 = vld [vmem:[#allocation2 + $0x20] sm:$0xff]
        %v539 = vld [vmem:[#allocation2 + $0x28] sm:$0xff]
        %v540 = vld [vmem:[#allocation2 + $0x30] sm:$0xff]
        %v541 = vld [vmem:[#allocation2 + $0x38] sm:$0xff]
        %v542 = vpack.c.bf16 %v536, %v534
        %v543 = vpack.c.bf16 %v537, %v535
        %v544 = vpack.c.bf16 %v540, %v538
        %v545 = vpack.c.bf16 %v541, %v539
        %v550 = vunpack.c.l.b16 %v530
        %v551 = vunpack.c.h.b16 %v530
        %v552 = vunpack.c.l.b16 %v531
        %v553 = vunpack.c.h.b16 %v531
        %v554 = vunpack.c.l.b16 %v532
        %v555 = vunpack.c.h.b16 %v532
        %v556 = vunpack.c.l.b16 %v533
        %v557 = vunpack.c.h.b16 %v533
        %v558 = vpack.c.b16 %v552, %v550
        %v559 = vpack.c.b16 %v553, %v551
        %v560 = vpack.c.b16 %v556, %v554
        %v561 = vpack.c.b16 %v557, %v555
        %566 = vxpose.binary.xlu0.c.b16.start [1/16] %v559, %v558, 128
        %567 = vxpose.binary.xlu0.c.b16.cont [2/16] %v561, %v560, 128
        %568 = vxpose.binary.xlu0.c.b16.cont [3/16] 0, 0, 128
        %569 = vxpose.binary.xlu0.c.b16.cont [4/16] 0, 0, 128
        %570 = vxpose.binary.xlu0.c.b16.cont [5/16] 0, 0, 128
        %571 = vxpose.binary.xlu0.c.b16.cont [6/16] 0, 0, 128
        %572 = vxpose.binary.xlu0.c.b16.cont [7/16] 0, 0, 128
        %573 = vxpose.binary.xlu0.c.b16.end [8/16] 0, 0, 128
        %v574 = vpop.trf.xlu0
        %v575 = vpop.trf.xlu0
        %v576 = vpop.trf.xlu0
        %v577 = vpop.trf.xlu0
        %v578 = vpop.trf.xlu0
        %v579 = vpop.trf.xlu0
        %v580 = vpop.trf.xlu0
        %v581 = vpop.trf.xlu0
        %v582 = vpop.trf.xlu0
        %v583 = vpop.trf.xlu0
        %v584 = vpop.trf.xlu0
        %v585 = vpop.trf.xlu0
        %v586 = vpop.trf.xlu0
        %v587 = vpop.trf.xlu0
        %v588 = vpop.trf.xlu0
        %v589 = vpop.trf.xlu0
        %vm590 = vcmask 261120
        %v592 = vsel %vm590, %v574, 0
        %v595 = vsel %vm590, %v576, 0
        %v598 = vsel %vm590, %v578, 0
        %v601 = vsel %vm590, %v580, 0
        %v604 = vsel %vm590, %v582, 0
        %v607 = vsel %vm590, %v584, 0
        %v610 = vsel %vm590, %v586, 0
        %v613 = vsel %vm590, %v588, 0
        %v616 = vsel %vm590, %v575, 0
        %v619 = vsel %vm590, %v577, 0
        %v622 = vsel %vm590, %v579, 0
        %v625 = vsel %vm590, %v581, 0
        %v628 = vsel %vm590, %v583, 0
        %v631 = vsel %vm590, %v585, 0
        %v634 = vsel %vm590, %v587, 0
        %v637 = vsel %vm590, %v589, 0
        %639 = vmatpush.bf16.msra.mxu0 0
        %640 = vmatpush.bf16.msra.mxu0 0
        %641 = vmatpush.bf16.msra.mxu0 0
        %642 = vmatpush.bf16.msra.mxu0 0
        %643 = vmatpush.bf16.msra.mxu0 0
        %644 = vmatpush.bf16.msra.mxu0 0
        %645 = vmatpush.bf16.msra.mxu0 %v544
        %646 = vmatpush.bf16.msra.mxu0 %v542
        %647 = vmatmul.bf16.gmra.mxu0 %v592
        %v648 = vpop.f32.mrf.mxu0
        %v649 = vadd.f32 0.0, %v648
        %v650 = vpop.f32.mrf.mxu0
        %v651 = vadd.f32 0.0, %v650
        %652 = vmatmul.bf16.gmra.mxu0 %v595
        %v653 = vpop.f32.mrf.mxu0
        %v654 = vadd.f32 0.0, %v653
        %v655 = vpop.f32.mrf.mxu0
        %v656 = vadd.f32 0.0, %v655
        %657 = vmatmul.bf16.gmra.mxu0 %v598
        %v658 = vpop.f32.mrf.mxu0
        %v659 = vadd.f32 0.0, %v658
        %v660 = vpop.f32.mrf.mxu0
        %v661 = vadd.f32 0.0, %v660
        %662 = vmatmul.bf16.gmra.mxu0 %v601
        %v663 = vpop.f32.mrf.mxu0
        %v664 = vadd.f32 0.0, %v663
        %v665 = vpop.f32.mrf.mxu0
        %v666 = vadd.f32 0.0, %v665
        %667 = vmatmul.bf16.gmra.mxu0 %v604
        %v668 = vpop.f32.mrf.mxu0
        %v669 = vadd.f32 0.0, %v668
        %v670 = vpop.f32.mrf.mxu0
        %v671 = vadd.f32 0.0, %v670
        %672 = vmatmul.bf16.gmra.mxu0 %v607
        %v673 = vpop.f32.mrf.mxu0
        %v674 = vadd.f32 0.0, %v673
        %v675 = vpop.f32.mrf.mxu0
        %v676 = vadd.f32 0.0, %v675
        %677 = vmatmul.bf16.gmra.mxu0 %v610
        %v678 = vpop.f32.mrf.mxu0
        %v679 = vadd.f32 0.0, %v678
        %v680 = vpop.f32.mrf.mxu0
        %v681 = vadd.f32 0.0, %v680
        %682 = vmatmul.bf16.gmra.mxu0 %v613
        %v683 = vpop.f32.mrf.mxu0
        %v684 = vadd.f32 0.0, %v683
        %v685 = vpop.f32.mrf.mxu0
        %v686 = vadd.f32 0.0, %v685
        %687 = vmatmul.bf16.gmra.mxu0 %v616
        %v688 = vpop.f32.mrf.mxu0
        %v689 = vadd.f32 0.0, %v688
        %v690 = vpop.f32.mrf.mxu0
        %v691 = vadd.f32 0.0, %v690
        %692 = vmatmul.bf16.gmra.mxu0 %v619
        %v693 = vpop.f32.mrf.mxu0
        %v694 = vadd.f32 0.0, %v693
        %v695 = vpop.f32.mrf.mxu0
        %v696 = vadd.f32 0.0, %v695
        %697 = vmatmul.bf16.gmra.mxu0 %v622
        %v698 = vpop.f32.mrf.mxu0
        %v699 = vadd.f32 0.0, %v698
        %v700 = vpop.f32.mrf.mxu0
        %v701 = vadd.f32 0.0, %v700
        %702 = vmatmul.bf16.gmra.mxu0 %v625
        %v703 = vpop.f32.mrf.mxu0
        %v704 = vadd.f32 0.0, %v703
        %v705 = vpop.f32.mrf.mxu0
        %v706 = vadd.f32 0.0, %v705
        %707 = vmatmul.bf16.gmra.mxu0 %v628
        %v708 = vpop.f32.mrf.mxu0
        %v709 = vadd.f32 0.0, %v708
        %v710 = vpop.f32.mrf.mxu0
        %v711 = vadd.f32 0.0, %v710
        %712 = vmatmul.bf16.gmra.mxu0 %v631
        %v713 = vpop.f32.mrf.mxu0
        %v714 = vadd.f32 0.0, %v713
        %v715 = vpop.f32.mrf.mxu0
        %v716 = vadd.f32 0.0, %v715
        %717 = vmatmul.bf16.gmra.mxu0 %v634
        %v718 = vpop.f32.mrf.mxu0
        %v719 = vadd.f32 0.0, %v718
        %v720 = vpop.f32.mrf.mxu0
        %v721 = vadd.f32 0.0, %v720
        %722 = vmatmul.bf16.gmra.mxu0 %v637
        %v723 = vpop.f32.mrf.mxu0
        %v724 = vadd.f32 0.0, %v723
        %v725 = vpop.f32.mrf.mxu0
        %v726 = vadd.f32 0.0, %v725
        %727 = vdwg.mxu0
        %728 = vmatpush.bf16.msra.mxu0 0
        %729 = vmatpush.bf16.msra.mxu0 0
        %730 = vmatpush.bf16.msra.mxu0 0
        %731 = vmatpush.bf16.msra.mxu0 0
        %732 = vmatpush.bf16.msra.mxu0 0
        %733 = vmatpush.bf16.msra.mxu0 0
        %734 = vmatpush.bf16.msra.mxu0 %v545
        %735 = vmatpush.bf16.msra.mxu0 %v543
        %736 = vmatmul.bf16.gmra.mxu0 %v592
        %v737 = vpop.f32.mrf.mxu0
        %v738 = vadd.f32 0.0, %v737
        %v739 = vpop.f32.mrf.mxu0
        %v740 = vadd.f32 0.0, %v739
        %741 = vmatmul.bf16.gmra.mxu0 %v595
        %v742 = vpop.f32.mrf.mxu0
        %v743 = vadd.f32 0.0, %v742
        %v744 = vpop.f32.mrf.mxu0
        %v745 = vadd.f32 0.0, %v744
        %746 = vmatmul.bf16.gmra.mxu0 %v598
        %v747 = vpop.f32.mrf.mxu0
        %v748 = vadd.f32 0.0, %v747
        %v749 = vpop.f32.mrf.mxu0
        %v750 = vadd.f32 0.0, %v749
        %751 = vmatmul.bf16.gmra.mxu0 %v601
        %v752 = vpop.f32.mrf.mxu0
        %v753 = vadd.f32 0.0, %v752
        %v754 = vpop.f32.mrf.mxu0
        %v755 = vadd.f32 0.0, %v754
        %756 = vmatmul.bf16.gmra.mxu0 %v604
        %v757 = vpop.f32.mrf.mxu0
        %v758 = vadd.f32 0.0, %v757
        %v759 = vpop.f32.mrf.mxu0
        %v760 = vadd.f32 0.0, %v759
        %761 = vmatmul.bf16.gmra.mxu0 %v607
        %v762 = vpop.f32.mrf.mxu0
        %v763 = vadd.f32 0.0, %v762
        %v764 = vpop.f32.mrf.mxu0
        %v765 = vadd.f32 0.0, %v764
        %766 = vmatmul.bf16.gmra.mxu0 %v610
        %v767 = vpop.f32.mrf.mxu0
        %v768 = vadd.f32 0.0, %v767
        %v769 = vpop.f32.mrf.mxu0
        %v770 = vadd.f32 0.0, %v769
        %771 = vmatmul.bf16.gmra.mxu0 %v613
        %v772 = vpop.f32.mrf.mxu0
        %v773 = vadd.f32 0.0, %v772
        %v774 = vpop.f32.mrf.mxu0
        %v775 = vadd.f32 0.0, %v774
        %776 = vmatmul.bf16.gmra.mxu0 %v616
        %v777 = vpop.f32.mrf.mxu0
        %v778 = vadd.f32 0.0, %v777
        %v779 = vpop.f32.mrf.mxu0
        %v780 = vadd.f32 0.0, %v779
        %781 = vmatmul.bf16.gmra.mxu0 %v619
        %v782 = vpop.f32.mrf.mxu0
        %v783 = vadd.f32 0.0, %v782
        %v784 = vpop.f32.mrf.mxu0
        %v785 = vadd.f32 0.0, %v784
        %786 = vmatmul.bf16.gmra.mxu0 %v622
        %v787 = vpop.f32.mrf.mxu0
        %v788 = vadd.f32 0.0, %v787
        %v789 = vpop.f32.mrf.mxu0
        %v790 = vadd.f32 0.0, %v789
        %791 = vmatmul.bf16.gmra.mxu0 %v625
        %v792 = vpop.f32.mrf.mxu0
        %v793 = vadd.f32 0.0, %v792
        %v794 = vpop.f32.mrf.mxu0
        %v795 = vadd.f32 0.0, %v794
        %796 = vmatmul.bf16.gmra.mxu0 %v628
        %v797 = vpop.f32.mrf.mxu0
        %v798 = vadd.f32 0.0, %v797
        %v799 = vpop.f32.mrf.mxu0
        %v800 = vadd.f32 0.0, %v799
        %801 = vmatmul.bf16.gmra.mxu0 %v631
        %v802 = vpop.f32.mrf.mxu0
        %v803 = vadd.f32 0.0, %v802
        %v804 = vpop.f32.mrf.mxu0
        %v805 = vadd.f32 0.0, %v804
        %806 = vmatmul.bf16.gmra.mxu0 %v634
        %v807 = vpop.f32.mrf.mxu0
        %v808 = vadd.f32 0.0, %v807
        %v809 = vpop.f32.mrf.mxu0
        %v810 = vadd.f32 0.0, %v809
        %811 = vmatmul.bf16.gmra.mxu0 %v637
        %v812 = vpop.f32.mrf.mxu0
        %v813 = vadd.f32 0.0, %v812
        %v814 = vpop.f32.mrf.mxu0
        %v815 = vadd.f32 0.0, %v814
        %816 = vdwg.mxu0
        %v817 = vld [vmem:[#allocation3] sm:$0x3]
        %v818 = vmax.f32 %v649, %v654
        %v819 = vmax.f32 %v651, %v656
        %v820 = vmax.f32 %v818, %v659
        %v821 = vmax.f32 %v819, %v661
        %v822 = vmax.f32 %v820, %v664
        %v823 = vmax.f32 %v821, %v666
        %v824 = vmax.f32 %v822, %v669
        %v825 = vmax.f32 %v823, %v671
        %v826 = vmax.f32 %v824, %v674
        %v827 = vmax.f32 %v825, %v676
        %v828 = vmax.f32 %v826, %v679
        %v829 = vmax.f32 %v827, %v681
        %v830 = vmax.f32 %v828, %v684
        %v831 = vmax.f32 %v829, %v686
        %v832 = vmax.f32 %v830, %v689
        %v833 = vmax.f32 %v831, %v691
        %v834 = vmax.f32 %v832, %v694
        %v835 = vmax.f32 %v833, %v696
        %v836 = vmax.f32 %v834, %v699
        %v837 = vmax.f32 %v835, %v701
        %v838 = vmax.f32 %v836, %v704
        %v839 = vmax.f32 %v837, %v706
        %v840 = vmax.f32 %v838, %v709
        %v841 = vmax.f32 %v839, %v711
        %v842 = vmax.f32 %v840, %v714
        %v843 = vmax.f32 %v841, %v716
        %v844 = vmax.f32 %v842, %v719
        %v845 = vmax.f32 %v843, %v721
        %v846 = vmax.f32 %v844, %v724
        %v847 = vmax.f32 %v845, %v726
        %v848 = vmax.f32 %v846, %v847
        %v849 = vrot.slane %v848, 4
        %v850 = vmax.f32 %v848, %v849
        %v851 = vrot.slane %v850, 2
        %v852 = vmax.f32 %v850, %v851
        %v853 = vrot.slane %v852, 1
        %v854 = vmax.f32 %v852, %v853
        %v855 = vmax.f32 %v738, %v743
        %v856 = vmax.f32 %v740, %v745
        %v857 = vmax.f32 %v855, %v748
        %v858 = vmax.f32 %v856, %v750
        %v859 = vmax.f32 %v857, %v753
        %v860 = vmax.f32 %v858, %v755
        %v861 = vmax.f32 %v859, %v758
        %v862 = vmax.f32 %v860, %v760
        %v863 = vmax.f32 %v861, %v763
        %v864 = vmax.f32 %v862, %v765
        %v865 = vmax.f32 %v863, %v768
        %v866 = vmax.f32 %v864, %v770
        %v867 = vmax.f32 %v865, %v773
        %v868 = vmax.f32 %v866, %v775
        %v869 = vmax.f32 %v867, %v778
        %v870 = vmax.f32 %v868, %v780
        %v871 = vmax.f32 %v869, %v783
        %v872 = vmax.f32 %v870, %v785
        %v873 = vmax.f32 %v871, %v788
        %v874 = vmax.f32 %v872, %v790
        %v875 = vmax.f32 %v873, %v793
        %v876 = vmax.f32 %v874, %v795
        %v877 = vmax.f32 %v875, %v798
        %v878 = vmax.f32 %v876, %v800
        %v879 = vmax.f32 %v877, %v803
        %v880 = vmax.f32 %v878, %v805
        %v881 = vmax.f32 %v879, %v808
        %v882 = vmax.f32 %v880, %v810
        %v883 = vmax.f32 %v881, %v813
        %v884 = vmax.f32 %v882, %v815
        %v885 = vmax.f32 %v883, %v884
        %v886 = vrot.slane %v885, 4
        %v887 = vmax.f32 %v885, %v886
        %v888 = vrot.slane %v887, 2
        %v889 = vmax.f32 %v887, %v888
        %v890 = vrot.slane %v889, 1
        %v891 = vmax.f32 %v889, %v890
        %v894 = vrot.slane %v891, 7
        %vm895 = vcmask 1040384
        %v896 = vsel %vm895, %v854, %v894
        %v898 = vmax.f32 %v817, %v896
        %v899 = vsub.f32 %v817, %v898
        %v900 = vmul.f32 %v899, 1.442695
        %v901 = vpow.pop %v900
        %v903 = vperm.slane %v898, 0
        %v904 = vperm.slane %v898, 1
        %v907 = vsub.f32 %v649, %v903
        %v908 = vsub.f32 %v738, %v904
        %v909 = vsub.f32 %v651, %v903
        %v910 = vsub.f32 %v740, %v904
        %v911 = vsub.f32 %v654, %v903
        %v912 = vsub.f32 %v743, %v904
        %v913 = vsub.f32 %v656, %v903
        %v914 = vsub.f32 %v745, %v904
        %v915 = vsub.f32 %v659, %v903
        %v916 = vsub.f32 %v748, %v904
        %v917 = vsub.f32 %v661, %v903
        %v918 = vsub.f32 %v750, %v904
        %v919 = vsub.f32 %v664, %v903
        %v920 = vsub.f32 %v753, %v904
        %v921 = vsub.f32 %v666, %v903
        %v922 = vsub.f32 %v755, %v904
        %v923 = vsub.f32 %v669, %v903
        %v924 = vsub.f32 %v758, %v904
        %v925 = vsub.f32 %v671, %v903
        %v926 = vsub.f32 %v760, %v904
        %v927 = vsub.f32 %v674, %v903
        %v928 = vsub.f32 %v763, %v904
        %v929 = vsub.f32 %v676, %v903
        %v930 = vsub.f32 %v765, %v904
        %v931 = vsub.f32 %v679, %v903
        %v932 = vsub.f32 %v768, %v904
        %v933 = vsub.f32 %v681, %v903
        %v934 = vsub.f32 %v770, %v904
        %v935 = vsub.f32 %v684, %v903
        %v936 = vsub.f32 %v773, %v904
        %v937 = vsub.f32 %v686, %v903
        %v938 = vsub.f32 %v775, %v904
        %v939 = vsub.f32 %v689, %v903
        %v940 = vsub.f32 %v778, %v904
        %v941 = vsub.f32 %v691, %v903
        %v942 = vsub.f32 %v780, %v904
        %v943 = vsub.f32 %v694, %v903
        %v944 = vsub.f32 %v783, %v904
        %v945 = vsub.f32 %v696, %v903
        %v946 = vsub.f32 %v785, %v904
        %v947 = vsub.f32 %v699, %v903
        %v948 = vsub.f32 %v788, %v904
        %v949 = vsub.f32 %v701, %v903
        %v950 = vsub.f32 %v790, %v904
        %v951 = vsub.f32 %v704, %v903
        %v952 = vsub.f32 %v793, %v904
        %v953 = vsub.f32 %v706, %v903
        %v954 = vsub.f32 %v795, %v904
        %v955 = vsub.f32 %v709, %v903
        %v956 = vsub.f32 %v798, %v904
        %v957 = vsub.f32 %v711, %v903
        %v958 = vsub.f32 %v800, %v904
        %v959 = vsub.f32 %v714, %v903
        %v960 = vsub.f32 %v803, %v904
        %v961 = vsub.f32 %v716, %v903
        %v962 = vsub.f32 %v805, %v904
        %v963 = vsub.f32 %v719, %v903
        %v964 = vsub.f32 %v808, %v904
        %v965 = vsub.f32 %v721, %v903
        %v966 = vsub.f32 %v810, %v904
        %v967 = vsub.f32 %v724, %v903
        %v968 = vsub.f32 %v813, %v904
        %v969 = vsub.f32 %v726, %v903
        %v970 = vsub.f32 %v815, %v904
        %v971 = vmul.f32 %v907, 1.442695
        %v972 = vpow.pop %v971
        %v973 = vmul.f32 %v908, 1.442695
        %v974 = vpow.pop %v973
        %v975 = vmul.f32 %v909, 1.442695
        %v976 = vpow.pop %v975
        %v977 = vmul.f32 %v910, 1.442695
        %v978 = vpow.pop %v977
        %v979 = vmul.f32 %v911, 1.442695
        %v980 = vpow.pop %v979
        %v981 = vmul.f32 %v912, 1.442695
        %v982 = vpow.pop %v981
        %v983 = vmul.f32 %v913, 1.442695
        %v984 = vpow.pop %v983
        %v985 = vmul.f32 %v914, 1.442695
        %v986 = vpow.pop %v985
        %v987 = vmul.f32 %v915, 1.442695
        %v988 = vpow.pop %v987
        %v989 = vmul.f32 %v916, 1.442695
        %v990 = vpow.pop %v989
        %v991 = vmul.f32 %v917, 1.442695
        %v992 = vpow.pop %v991
        %v993 = vmul.f32 %v918, 1.442695
        %v994 = vpow.pop %v993
        %v995 = vmul.f32 %v919, 1.442695
        %v996 = vpow.pop %v995
        %v997 = vmul.f32 %v920, 1.442695
        %v998 = vpow.pop %v997
        %v999 = vmul.f32 %v921, 1.442695
        %v1000 = vpow.pop %v999
        %v1001 = vmul.f32 %v922, 1.442695
        %v1002 = vpow.pop %v1001
        %v1003 = vmul.f32 %v923, 1.442695
        %v1004 = vpow.pop %v1003
        %v1005 = vmul.f32 %v924, 1.442695
        %v1006 = vpow.pop %v1005
        %v1007 = vmul.f32 %v925, 1.442695
        %v1008 = vpow.pop %v1007
        %v1009 = vmul.f32 %v926, 1.442695
        %v1010 = vpow.pop %v1009
        %v1011 = vmul.f32 %v927, 1.442695
        %v1012 = vpow.pop %v1011
        %v1013 = vmul.f32 %v928, 1.442695
        %v1014 = vpow.pop %v1013
        %v1015 = vmul.f32 %v929, 1.442695
        %v1016 = vpow.pop %v1015
        %v1017 = vmul.f32 %v930, 1.442695
        %v1018 = vpow.pop %v1017
        %v1019 = vmul.f32 %v931, 1.442695
        %v1020 = vpow.pop %v1019
        %v1021 = vmul.f32 %v932, 1.442695
        %v1022 = vpow.pop %v1021
        %v1023 = vmul.f32 %v933, 1.442695
        %v1024 = vpow.pop %v1023
        %v1025 = vmul.f32 %v934, 1.442695
        %v1026 = vpow.pop %v1025
        %v1027 = vmul.f32 %v935, 1.442695
        %v1028 = vpow.pop %v1027
        %v1029 = vmul.f32 %v936, 1.442695
        %v1030 = vpow.pop %v1029
        %v1031 = vmul.f32 %v937, 1.442695
        %v1032 = vpow.pop %v1031
        %v1033 = vmul.f32 %v938, 1.442695
        %v1034 = vpow.pop %v1033
        %v1035 = vmul.f32 %v939, 1.442695
        %v1036 = vpow.pop %v1035
        %v1037 = vmul.f32 %v940, 1.442695
        %v1038 = vpow.pop %v1037
        %v1039 = vmul.f32 %v941, 1.442695
        %v1040 = vpow.pop %v1039
        %v1041 = vmul.f32 %v942, 1.442695
        %v1042 = vpow.pop %v1041
        %v1043 = vmul.f32 %v943, 1.442695
        %v1044 = vpow.pop %v1043
        %v1045 = vmul.f32 %v944, 1.442695
        %v1046 = vpow.pop %v1045
        %v1047 = vmul.f32 %v945, 1.442695
        %v1048 = vpow.pop %v1047
        %v1049 = vmul.f32 %v946, 1.442695
        %v1050 = vpow.pop %v1049
        %v1051 = vmul.f32 %v947, 1.442695
        %v1052 = vpow.pop %v1051
        %v1053 = vmul.f32 %v948, 1.442695
        %v1054 = vpow.pop %v1053
        %v1055 = vmul.f32 %v949, 1.442695
        %v1056 = vpow.pop %v1055
        %v1057 = vmul.f32 %v950, 1.442695
        %v1058 = vpow.pop %v1057
        %v1059 = vmul.f32 %v951, 1.442695
        %v1060 = vpow.pop %v1059
        %v1061 = vmul.f32 %v952, 1.442695
        %v1062 = vpow.pop %v1061
        %v1063 = vmul.f32 %v953, 1.442695
        %v1064 = vpow.pop %v1063
        %v1065 = vmul.f32 %v954, 1.442695
        %v1066 = vpow.pop %v1065
        %v1067 = vmul.f32 %v955, 1.442695
        %v1068 = vpow.pop %v1067
        %v1069 = vmul.f32 %v956, 1.442695
        %v1070 = vpow.pop %v1069
        %v1071 = vmul.f32 %v957, 1.442695
        %v1072 = vpow.pop %v1071
        %v1073 = vmul.f32 %v958, 1.442695
        %v1074 = vpow.pop %v1073
        %v1075 = vmul.f32 %v959, 1.442695
        %v1076 = vpow.pop %v1075
        %v1077 = vmul.f32 %v960, 1.442695
        %v1078 = vpow.pop %v1077
        %v1079 = vmul.f32 %v961, 1.442695
        %v1080 = vpow.pop %v1079
        %v1081 = vmul.f32 %v962, 1.442695
        %v1082 = vpow.pop %v1081
        %v1083 = vmul.f32 %v963, 1.442695
        %v1084 = vpow.pop %v1083
        %v1085 = vmul.f32 %v964, 1.442695
        %v1086 = vpow.pop %v1085
        %v1087 = vmul.f32 %v965, 1.442695
        %v1088 = vpow.pop %v1087
        %v1089 = vmul.f32 %v966, 1.442695
        %v1090 = vpow.pop %v1089
        %v1091 = vmul.f32 %v967, 1.442695
        %v1092 = vpow.pop %v1091
        %v1093 = vmul.f32 %v968, 1.442695
        %v1094 = vpow.pop %v1093
        %v1095 = vmul.f32 %v969, 1.442695
        %v1096 = vpow.pop %v1095
        %v1097 = vmul.f32 %v970, 1.442695
        %v1098 = vpow.pop %v1097
        %v1099 = vld [vmem:[#allocation4] sm:$0x3]
        %v1100 = vmul.f32 %v901, %v1099
        %v1101 = vadd.f32 %v972, %v976
        %v1102 = vadd.f32 %v1101, %v980
        %v1103 = vadd.f32 %v1102, %v984
        %v1104 = vadd.f32 %v1103, %v988
        %v1105 = vadd.f32 %v1104, %v992
        %v1106 = vadd.f32 %v1105, %v996
        %v1107 = vadd.f32 %v1106, %v1000
        %v1108 = vadd.f32 %v1107, %v1004
        %v1109 = vadd.f32 %v1108, %v1008
        %v1110 = vadd.f32 %v1109, %v1012
        %v1111 = vadd.f32 %v1110, %v1016
        %v1112 = vadd.f32 %v1111, %v1020
        %v1113 = vadd.f32 %v1112, %v1024
        %v1114 = vadd.f32 %v1113, %v1028
        %v1115 = vadd.f32 %v1114, %v1032
        %v1116 = vadd.f32 %v1115, %v1036
        %v1117 = vadd.f32 %v1116, %v1040
        %v1118 = vadd.f32 %v1117, %v1044
        %v1119 = vadd.f32 %v1118, %v1048
        %v1120 = vadd.f32 %v1119, %v1052
        %v1121 = vadd.f32 %v1120, %v1056
        %v1122 = vadd.f32 %v1121, %v1060
        %v1123 = vadd.f32 %v1122, %v1064
        %v1124 = vadd.f32 %v1123, %v1068
        %v1125 = vadd.f32 %v1124, %v1072
        %v1126 = vadd.f32 %v1125, %v1076
        %v1127 = vadd.f32 %v1126, %v1080
        %v1128 = vadd.f32 %v1127, %v1084
        %v1129 = vadd.f32 %v1128, %v1088
        %v1130 = vadd.f32 %v1129, %v1092
        %v1131 = vadd.f32 %v1130, %v1096
        %v1132 = vrot.slane %v1131, 4
        %v1133 = vadd.f32 %v1131, %v1132
        %v1134 = vrot.slane %v1133, 2
        %v1135 = vadd.f32 %v1133, %v1134
        %v1136 = vrot.slane %v1135, 1
        %v1137 = vadd.f32 %v1135, %v1136
        %v1138 = vadd.f32 %v974, %v978
        %v1139 = vadd.f32 %v1138, %v982
        %v1140 = vadd.f32 %v1139, %v986
        %v1141 = vadd.f32 %v1140, %v990
        %v1142 = vadd.f32 %v1141, %v994
        %v1143 = vadd.f32 %v1142, %v998
        %v1144 = vadd.f32 %v1143, %v1002
        %v1145 = vadd.f32 %v1144, %v1006
        %v1146 = vadd.f32 %v1145, %v1010
        %v1147 = vadd.f32 %v1146, %v1014
        %v1148 = vadd.f32 %v1147, %v1018
        %v1149 = vadd.f32 %v1148, %v1022
        %v1150 = vadd.f32 %v1149, %v1026
        %v1151 = vadd.f32 %v1150, %v1030
        %v1152 = vadd.f32 %v1151, %v1034
        %v1153 = vadd.f32 %v1152, %v1038
        %v1154 = vadd.f32 %v1153, %v1042
        %v1155 = vadd.f32 %v1154, %v1046
        %v1156 = vadd.f32 %v1155, %v1050
        %v1157 = vadd.f32 %v1156, %v1054
        %v1158 = vadd.f32 %v1157, %v1058
        %v1159 = vadd.f32 %v1158, %v1062
        %v1160 = vadd.f32 %v1159, %v1066
        %v1161 = vadd.f32 %v1160, %v1070
        %v1162 = vadd.f32 %v1161, %v1074
        %v1163 = vadd.f32 %v1162, %v1078
        %v1164 = vadd.f32 %v1163, %v1082
        %v1165 = vadd.f32 %v1164, %v1086
        %v1166 = vadd.f32 %v1165, %v1090
        %v1167 = vadd.f32 %v1166, %v1094
        %v1168 = vadd.f32 %v1167, %v1098
        %v1169 = vrot.slane %v1168, 4
        %v1170 = vadd.f32 %v1168, %v1169
        %v1171 = vrot.slane %v1170, 2
        %v1172 = vadd.f32 %v1170, %v1171
        %v1173 = vrot.slane %v1172, 1
        %v1174 = vadd.f32 %v1172, %v1173
        %v1177 = vrot.slane %v1174, 7
        %v1178 = vsel %vm895, %v1137, %v1177
        %v1180 = vadd.f32 %v1100, %v1178
        %v1181 = vlaneseq
        %vm1182 = vcmp.ge.s32.totalorder %v1181, 0
        %vm1183 = vcmp.lt.s32.totalorder %v1181, 256
        %vm1184 = vmand %vm1182, %vm1183
        %1185 = vst.msk [vmem:[#allocation4] sm:$0x3] %vm1184, %v1180
        %1186 = vst.msk [vmem:[#allocation3] sm:$0x3] %vm1184, %v898
        %v1187 = vld [vmem:[#allocation5] sm:$0xff]
        %v1188 = vld [vmem:[#allocation5 + $0x8] sm:$0xff]
        %v1189 = vld [vmem:[#allocation5 + $0x10] sm:$0xff]
        %v1190 = vld [vmem:[#allocation5 + $0x18] sm:$0xff]
        %v1191 = vld [vmem:[#allocation5 + $0x20] sm:$0xff]
        %v1192 = vld [vmem:[#allocation5 + $0x28] sm:$0xff]
        %v1193 = vld [vmem:[#allocation5 + $0x30] sm:$0xff]
        %v1194 = vld [vmem:[#allocation5 + $0x38] sm:$0xff]
        %v1196 = vperm.slane %v901, 0
        %v1197 = vperm.slane %v901, 1
        %v1200 = vmul.f32 %v1196, %v1187
        %v1201 = vmul.f32 %v1197, %v1188
        %v1202 = vmul.f32 %v1196, %v1189
        %v1203 = vmul.f32 %v1197, %v1190
        %v1204 = vmul.f32 %v1196, %v1191
        %v1205 = vmul.f32 %v1197, %v1192
        %v1206 = vmul.f32 %v1196, %v1193
        %v1207 = vmul.f32 %v1197, %v1194
        %v1208 = vpack.c.bf16 %v976, %v972
        %v1209 = vpack.c.bf16 %v978, %v974
        %v1210 = vpack.c.bf16 %v984, %v980
        %v1211 = vpack.c.bf16 %v986, %v982
        %v1212 = vpack.c.bf16 %v992, %v988
        %v1213 = vpack.c.bf16 %v994, %v990
        %v1214 = vpack.c.bf16 %v1000, %v996
        %v1215 = vpack.c.bf16 %v1002, %v998
        %v1216 = vpack.c.bf16 %v1008, %v1004
        %v1217 = vpack.c.bf16 %v1010, %v1006
        %v1218 = vpack.c.bf16 %v1016, %v1012
        %v1219 = vpack.c.bf16 %v1018, %v1014
        %v1220 = vpack.c.bf16 %v1024, %v1020
        %v1221 = vpack.c.bf16 %v1026, %v1022
        %v1222 = vpack.c.bf16 %v1032, %v1028
        %v1223 = vpack.c.bf16 %v1034, %v1030
        %v1224 = vpack.c.bf16 %v1040, %v1036
        %v1225 = vpack.c.bf16 %v1042, %v1038
        %v1226 = vpack.c.bf16 %v1048, %v1044
        %v1227 = vpack.c.bf16 %v1050, %v1046
        %v1228 = vpack.c.bf16 %v1056, %v1052
        %v1229 = vpack.c.bf16 %v1058, %v1054
        %v1230 = vpack.c.bf16 %v1064, %v1060
        %v1231 = vpack.c.bf16 %v1066, %v1062
        %v1232 = vpack.c.bf16 %v1072, %v1068
        %v1233 = vpack.c.bf16 %v1074, %v1070
        %v1234 = vpack.c.bf16 %v1080, %v1076
        %v1235 = vpack.c.bf16 %v1082, %v1078
        %v1236 = vpack.c.bf16 %v1088, %v1084
        %v1237 = vpack.c.bf16 %v1090, %v1086
        %v1238 = vpack.c.bf16 %v1096, %v1092
        %v1239 = vpack.c.bf16 %v1098, %v1094
        %1240 = vmatpush.bf16.msra.mxu0 %v1222
        %1241 = vmatpush.bf16.msra.mxu0 %v1220
        %1242 = vmatpush.bf16.msra.mxu0 %v1218
        %1243 = vmatpush.bf16.msra.mxu0 %v1216
        %1244 = vmatpush.bf16.msra.mxu0 %v1214
        %1245 = vmatpush.bf16.msra.mxu0 %v1212
        %1246 = vmatpush.bf16.msra.mxu0 %v1210
        %1247 = vmatpush.bf16.msra.mxu0 %v1208
        %1248 = vmatmul.bf16.gmra.mxu0 %v558
        %v1249 = vpop.f32.mrf.mxu0
        %v1250 = vadd.f32 0.0, %v1249
        %v1251 = vpop.f32.mrf.mxu0
        %v1252 = vadd.f32 0.0, %v1251
        %1253 = vmatmul.bf16.gmra.mxu0 %v560
        %v1254 = vpop.f32.mrf.mxu0
        %v1255 = vadd.f32 0.0, %v1254
        %v1256 = vpop.f32.mrf.mxu0
        %v1257 = vadd.f32 0.0, %v1256
        %1258 = vdwg.mxu0
        %1259 = vmatpush.bf16.msra.mxu0 %v1238
        %1260 = vmatpush.bf16.msra.mxu0 %v1236
        %1261 = vmatpush.bf16.msra.mxu0 %v1234
        %1262 = vmatpush.bf16.msra.mxu0 %v1232
        %1263 = vmatpush.bf16.msra.mxu0 %v1230
        %1264 = vmatpush.bf16.msra.mxu0 %v1228
        %1265 = vmatpush.bf16.msra.mxu0 %v1226
        %1266 = vmatpush.bf16.msra.mxu0 %v1224
        %1267 = vmatmul.bf16.gmra.mxu0 %v559
        %v1268 = vpop.f32.mrf.mxu0
        %v1269 = vadd.f32 %v1250, %v1268
        %v1270 = vpop.f32.mrf.mxu0
        %v1271 = vadd.f32 %v1252, %v1270
        %1272 = vmatmul.bf16.gmra.mxu0 %v561
        %v1273 = vpop.f32.mrf.mxu0
        %v1274 = vadd.f32 %v1255, %v1273
        %v1275 = vpop.f32.mrf.mxu0
        %v1276 = vadd.f32 %v1257, %v1275
        %1277 = vdwg.mxu0
        %1278 = vmatpush.bf16.msra.mxu0 %v1223
        %1279 = vmatpush.bf16.msra.mxu0 %v1221
        %1280 = vmatpush.bf16.msra.mxu0 %v1219
        %1281 = vmatpush.bf16.msra.mxu0 %v1217
        %1282 = vmatpush.bf16.msra.mxu0 %v1215
        %1283 = vmatpush.bf16.msra.mxu0 %v1213
        %1284 = vmatpush.bf16.msra.mxu0 %v1211
        %1285 = vmatpush.bf16.msra.mxu0 %v1209
        %1286 = vmatmul.bf16.gmra.mxu0 %v558
        %v1287 = vpop.f32.mrf.mxu0
        %v1288 = vadd.f32 0.0, %v1287
        %v1289 = vpop.f32.mrf.mxu0
        %v1290 = vadd.f32 0.0, %v1289
        %1291 = vmatmul.bf16.gmra.mxu0 %v560
        %v1292 = vpop.f32.mrf.mxu0
        %v1293 = vadd.f32 0.0, %v1292
        %v1294 = vpop.f32.mrf.mxu0
        %v1295 = vadd.f32 0.0, %v1294
        %1296 = vdwg.mxu0
        %1297 = vmatpush.bf16.msra.mxu0 %v1239
        %1298 = vmatpush.bf16.msra.mxu0 %v1237
        %1299 = vmatpush.bf16.msra.mxu0 %v1235
        %1300 = vmatpush.bf16.msra.mxu0 %v1233
        %1301 = vmatpush.bf16.msra.mxu0 %v1231
        %1302 = vmatpush.bf16.msra.mxu0 %v1229
        %1303 = vmatpush.bf16.msra.mxu0 %v1227
        %1304 = vmatpush.bf16.msra.mxu0 %v1225
        %1305 = vmatmul.bf16.gmra.mxu0 %v559
        %v1306 = vpop.f32.mrf.mxu0
        %v1307 = vadd.f32 %v1288, %v1306
        %v1308 = vpop.f32.mrf.mxu0
        %v1309 = vadd.f32 %v1290, %v1308
        %1310 = vmatmul.bf16.gmra.mxu0 %v561
        %v1311 = vpop.f32.mrf.mxu0
        %v1312 = vadd.f32 %v1293, %v1311
        %v1313 = vpop.f32.mrf.mxu0
        %v1314 = vadd.f32 %v1295, %v1313
        %1315 = vdwg.mxu0
        %v1316 = vadd.f32 %v1200, %v1269
        %v1317 = vadd.f32 %v1201, %v1307
        %v1318 = vadd.f32 %v1202, %v1271
        %v1319 = vadd.f32 %v1203, %v1309
        %v1320 = vadd.f32 %v1204, %v1274
        %v1321 = vadd.f32 %v1205, %v1312
        %v1322 = vadd.f32 %v1206, %v1276
        %v1323 = vadd.f32 %v1207, %v1314
        %1324 = vst [vmem:[#allocation5] sm:$0xff] %v1316
        %1325 = vst [vmem:[#allocation5 + $0x8] sm:$0xff] %v1317
        %1326 = vst [vmem:[#allocation5 + $0x10] sm:$0xff] %v1318
        %1327 = vst [vmem:[#allocation5 + $0x18] sm:$0xff] %v1319
        %1328 = vst [vmem:[#allocation5 + $0x20] sm:$0xff] %v1320
        %1329 = vst [vmem:[#allocation5 + $0x28] sm:$0xff] %v1321
        %1330 = vst [vmem:[#allocation5 + $0x30] sm:$0xff] %v1322
        %1331 = vst [vmem:[#allocation5 + $0x38] sm:$0xff] %v1323
        // Predicated region
        $region65: #{tpu_custom_call.1} parent=47 // pred_check
          %p1332 = pneg %p397
        $region66: #{tpu_custom_call.1} parent=47 // pred_check_branch
          %1334 = sbr.rel (%p1332) target = $region68
        $region67: #{tpu_custom_call.1} parent=47 // pred_region
          %v1335 = vld [vmem:[#allocation4] sm:$0x3]
          %v1336 = vrcp.pop %v1335
          %v1337 = vld [vmem:[#allocation5] sm:$0xff]
          %v1338 = vld [vmem:[#allocation5 + $0x8] sm:$0xff]
          %v1339 = vld [vmem:[#allocation5 + $0x10] sm:$0xff]
          %v1340 = vld [vmem:[#allocation5 + $0x18] sm:$0xff]
          %v1341 = vld [vmem:[#allocation5 + $0x20] sm:$0xff]
          %v1342 = vld [vmem:[#allocation5 + $0x28] sm:$0xff]
          %v1343 = vld [vmem:[#allocation5 + $0x30] sm:$0xff]
          %v1344 = vld [vmem:[#allocation5 + $0x38] sm:$0xff]
          %v1346 = vperm.slane %v1336, 0
          %v1347 = vperm.slane %v1336, 1
          %v1350 = vmul.f32 %v1337, %v1346
          %v1351 = vmul.f32 %v1338, %v1347
          %v1352 = vmul.f32 %v1339, %v1346
          %v1353 = vmul.f32 %v1340, %v1347
          %v1354 = vmul.f32 %v1341, %v1346
          %v1355 = vmul.f32 %v1342, %v1347
          %v1356 = vmul.f32 %v1343, %v1346
          %v1357 = vmul.f32 %v1344, %v1347
          %v1358 = vld [vmem:[#allocation12] sm:$0xff]
          %v1359 = vld [vmem:[#allocation12 + $0x8] sm:$0xff]
          %v1360 = vld [vmem:[#allocation12 + $0x10] sm:$0xff]
          %v1361 = vld [vmem:[#allocation12 + $0x18] sm:$0xff]
          %v1362 = vld [vmem:[%s5] sm:$0xff]
          %v1363 = vld [vmem:[%s5 + $0x8] sm:$0xff]
          %v1364 = vld [vmem:[%s5 + $0x10] sm:$0xff]
          %v1365 = vld [vmem:[%s5 + $0x18] sm:$0xff]
          %1367 = vset.pattern.permute.xlu0 0
          %1368 = vperm.xlu0 %1367, %v1362
          %v1369 = vpop.permute.xlu0 %1368
          %1372 = vset.pattern.permute.xlu0 0
          %1373 = vperm.xlu0 %1372, %v1363
          %v1374 = vpop.permute.xlu0 %1373
          %1377 = vset.pattern.permute.xlu0 0
          %1378 = vperm.xlu0 %1377, %v1364
          %v1379 = vpop.permute.xlu0 %1378
          %1382 = vset.pattern.permute.xlu0 0
          %1383 = vperm.xlu0 %1382, %v1365
          %v1384 = vpop.permute.xlu0 %1383
          %v1387 = vsel %vm590, %v1358, 0
          %v1390 = vsel %vm590, %v1359, 0
          %v1393 = vsel %vm590, %v1360, 0
          %v1396 = vsel %vm590, %v1361, 0
          %1398 = vmatpush.msra.mxu0 0.0
          %1399 = vmatpush.msra.mxu0 0.0
          %1400 = vmatpush.msra.mxu0 0.0
          %1401 = vmatpush.msra.mxu0 0.0
          %1402 = vmatpush.msra.mxu0 0.0
          %1403 = vmatpush.msra.mxu0 0.0
          %1404 = vmatpush.msra.mxu0 0.0
          %1405 = vmatpush.msra.mxu0 0.0
          %1406 = vmatpush.msra.mxu0 0.0
          %1407 = vmatpush.msra.mxu0 0.0
          %1408 = vmatpush.msra.mxu0 0.0
          %1409 = vmatpush.msra.mxu0 0.0
          %1410 = vmatpush.msra.mxu0 %v1356
          %1411 = vmatpush.msra.mxu0 %v1354
          %1412 = vmatpush.msra.mxu0 %v1352
          %1413 = vmatpush.msra.mxu0 %v1350
          %1414 = vmatmul.f32.gmra.mxu0 %v1387
          %v1415 = vpop.f32.mrf.mxu0
          %v1416 = vadd.f32 %v1369, %v1415
          %1417 = vmatmul.f32.gmra.mxu0 %v1390
          %v1418 = vpop.f32.mrf.mxu0
          %v1419 = vadd.f32 %v1374, %v1418
          %1420 = vmatmul.f32.gmra.mxu0 %v1393
          %v1421 = vpop.f32.mrf.mxu0
          %v1422 = vadd.f32 %v1379, %v1421
          %1423 = vmatmul.f32.gmra.mxu0 %v1396
          %v1424 = vpop.f32.mrf.mxu0
          %v1425 = vadd.f32 %v1384, %v1424
          %1426 = vdwg.mxu0
          %1427 = vmatpush.msra.mxu0 0.0
          %1428 = vmatpush.msra.mxu0 0.0
          %1429 = vmatpush.msra.mxu0 0.0
          %1430 = vmatpush.msra.mxu0 0.0
          %1431 = vmatpush.msra.mxu0 0.0
          %1432 = vmatpush.msra.mxu0 0.0
          %1433 = vmatpush.msra.mxu0 0.0
          %1434 = vmatpush.msra.mxu0 0.0
          %1435 = vmatpush.msra.mxu0 0.0
          %1436 = vmatpush.msra.mxu0 0.0
          %1437 = vmatpush.msra.mxu0 0.0
          %1438 = vmatpush.msra.mxu0 0.0
          %1439 = vmatpush.msra.mxu0 %v1357
          %1440 = vmatpush.msra.mxu0 %v1355
          %1441 = vmatpush.msra.mxu0 %v1353
          %1442 = vmatpush.msra.mxu0 %v1351
          %1443 = vmatmul.f32.gmra.mxu0 %v1387
          %v1444 = vpop.f32.mrf.mxu0
          %v1445 = vadd.f32 %v1369, %v1444
          %1446 = vmatmul.f32.gmra.mxu0 %v1390
          %v1447 = vpop.f32.mrf.mxu0
          %v1448 = vadd.f32 %v1374, %v1447
          %1449 = vmatmul.f32.gmra.mxu0 %v1393
          %v1450 = vpop.f32.mrf.mxu0
          %v1451 = vadd.f32 %v1379, %v1450
          %1452 = vmatmul.f32.gmra.mxu0 %v1396
          %v1453 = vpop.f32.mrf.mxu0
          %v1454 = vadd.f32 %v1384, %v1453
          %1455 = vdwg.mxu0
          %v1456 = vld [vmem:[%s333] sm:$0xff]
          %v1457 = vld [vmem:[%s333 + $0x8] sm:$0xff]
          %v1458 = vld [vmem:[%s333 + $0x10] sm:$0xff]
          %v1459 = vld [vmem:[%s333 + $0x18] sm:$0xff]
          %v1460 = vld [vmem:[%s333 + $0x20] sm:$0xff]
          %v1461 = vld [vmem:[%s333 + $0x28] sm:$0xff]
          %v1462 = vld [vmem:[%s333 + $0x30] sm:$0xff]
          %v1463 = vld [vmem:[%s333 + $0x38] sm:$0xff]
          %s1464 = sld [smem:[#allocation6]]
          %v1465 = vstv %s1464
          %v1466 = vmul.f32 %v1465, %v1416
          %v1467 = vmul.f32 %v1465, %v1445
          %v1468 = vmul.f32 %v1465, %v1419
          %v1469 = vmul.f32 %v1465, %v1448
          %v1470 = vmul.f32 %v1465, %v1422
          %v1471 = vmul.f32 %v1465, %v1451
          %v1472 = vmul.f32 %v1465, %v1425
          %v1473 = vmul.f32 %v1465, %v1454
          %v1474 = vadd.f32 %v1456, %v1466
          %v1475 = vadd.f32 %v1457, %v1467
          %v1476 = vadd.f32 %v1458, %v1468
          %v1477 = vadd.f32 %v1459, %v1469
          %v1478 = vadd.f32 %v1460, %v1470
          %v1479 = vadd.f32 %v1461, %v1471
          %v1480 = vadd.f32 %v1462, %v1472
          %v1481 = vadd.f32 %v1463, %v1473
          %1482 = vst [vmem:[%s383] sm:$0xff] %v1474
          %1483 = vst [vmem:[%s383 + $0x8] sm:$0xff] %v1475
          %1484 = vst [vmem:[%s383 + $0x10] sm:$0xff] %v1476
          %1485 = vst [vmem:[%s383 + $0x18] sm:$0xff] %v1477
          %1486 = vst [vmem:[%s383 + $0x20] sm:$0xff] %v1478
          %1487 = vst [vmem:[%s383 + $0x28] sm:$0xff] %v1479
          %1488 = vst [vmem:[%s383 + $0x30] sm:$0xff] %v1480
          %1489 = vst [vmem:[%s383 + $0x38] sm:$0xff] %v1481
        $region68: #{tpu_custom_call.1} parent=47 // pred_fallthru
          _
        %s1490 = sand.u32 %s216, 1
        %s1491 = scalar_lea.sflag [#allocation9], %s1490
        %s1492 = sand.u32 %s216, 1
        %s1493 = smul.addr %s1492, 64
        %s1494 = scalar_lea.vmem [#allocation13], %s1493
        // Predicated region
        $region69: #{tpu_custom_call.1} parent=47 // pred_check
          %p1495 = pneg %p226
        $region70: #{tpu_custom_call.1} parent=47 // pred_check_branch
          %1497 = sbr.rel (%p1495) target = $region72
        $region71: #{tpu_custom_call.1} parent=47 // pred_region
          %s1498 = smul.u32 2, %s32
          %1500 = vsyncadd %s1491, 0
          %s1501 = smul.addr %s31, 8
          %s1502 = sadd.s32 %s1498, %s1501
          %s1503 = smul.addr %s1502, 8
          %s1504 = scalar_lea.hbm %s7, %s1503
          %s1505 = sshll.u32 %s1494, 4
          %s1506 = int_to_ptr.vmem [resolvable:$true] %s1505
          %s1507 = sshll.u32 %s1504, 4
          %s1508 = int_to_ptr.hbm [resolvable:$true] %s1507
          %1513 = dma.vmem_to_hbm [thread:$0]  %s1506, 1024, %s1508, %s1491, 256, 256, 16
        $region72: #{tpu_custom_call.1} parent=47 // pred_fallthru
          _
      $region48: #{tpu_custom_call.1} parent=5 // pred_fallthru
        _
      %p1514 = scmp.le.s32.totalorder 2, %s21
      // Predicated region
      $region73: #{tpu_custom_call.1} parent=5 // pred_check
        %p1515 = pneg %p1514
      $region74: #{tpu_custom_call.1} parent=5 // pred_check_branch
        %1517 = sbr.rel (%p1515) target = $region76
      $region75: #{tpu_custom_call.1} parent=5 // pred_region
        %s1518 = ssub.s32 %s21, 2
        // Predicated region
        $region77: #{tpu_custom_call.1} parent=75 // pred_check
          %p1519 = pneg %p232
        $region78: #{tpu_custom_call.1} parent=75 // pred_check_branch
          %1521 = sbr.rel (%p1519) target = $region80
        $region79: #{tpu_custom_call.1} parent=75 // pred_region
          %s1522 = sand.u32 %s217, 1
          %s1523 = scalar_lea.sflag [#allocation9], %s1522
          %s1524 = sand.u32 %s217, 1
          %s1525 = smul.addr %s1524, 64
          %s1526 = scalar_lea.vmem [#allocation13], %s1525
          %1528 = dma.done %s1523, 1024
        $region80: #{tpu_custom_call.1} parent=75 // pred_fallthru
          _
      $region76: #{tpu_custom_call.1} parent=5 // pred_fallthru
        _
    $region6: #{tpu_custom_call.1} parent=1 // loop_footer
      %s25 = sadd.s32 1, %s21
    $region7: #{tpu_custom_call.1} parent=1 // loop_footer_branch
      %20 = sbr.rel target = $region3
    $region8: #{tpu_custom_call.1} parent=1 // loop_exit
      _
    %1529 = vsyncpa [#allocation8], 1
    %s1530 = scalar_lea.sflag [#allocation8], 1
    %1531 = vsyncpa %s1530, 1
    %1532 = vsyncpa [#allocation11], 1
    %1533 = vsyncpa [#allocation9], 1
    %s1534 = scalar_lea.sflag [#allocation9], 1
    %1535 = vsyncpa %s1534, 1

</llo_original>
